<compile_context>
chip_gen: v5e
topology: v5e:2x2
jax: 0.10.0
libtpu: 0.0.40
codegen_flags: <defaults>
</compile_context>

<pallas_src>
import jax
import jax.numpy as jnp
from jax.experimental import pallas as pl
from jax.experimental.pallas import tpu as pltpu


# -----------------------------------------------------------------------------
# Glue: separable interpolation / roi_align weight matrices (tiny, plain JAX)
# -----------------------------------------------------------------------------
def _upsample_matrix(in_dim, out_dim):
    """PyTorch bilinear upsample (align_corners=False) weights, [out_dim, in_dim]."""
    o = jnp.arange(out_dim, dtype=jnp.float32)
    src = jnp.maximum((o + 0.5) * (float(in_dim) / float(out_dim)) - 0.5, 0.0)
    i0 = jnp.floor(src)
    i1 = jnp.minimum(i0 + 1.0, float(in_dim) - 1.0)
    lam = src - i0
    d = jnp.arange(in_dim, dtype=jnp.float32)[None, :]
    return ((1.0 - lam)[:, None] * (d == i0[:, None]).astype(jnp.float32)
            + lam[:, None] * (d == i1[:, None]).astype(jnp.float32))


def _roi_axis_matrix(start, length, out_dim, in_dim, sampling_ratio):
    """Per-RoI 1-D roi_align weights.  start/length: [K] -> [K, out_dim, in_dim]."""
    S = int(sampling_ratio)
    bin_sz = length / float(out_dim)                                   # [K]
    p = jnp.arange(out_dim, dtype=jnp.float32)[None, :, None]          # [1,P,1]
    s = jnp.arange(S, dtype=jnp.float32)[None, None, :]                # [1,1,S]
    pos = (start[:, None, None] + p * bin_sz[:, None, None]
           + (s + 0.5) * bin_sz[:, None, None] / float(S))             # [K,P,S]
    valid = (pos >= -1.0) & (pos <= float(in_dim))
    pc = jnp.maximum(pos, 0.0)
    low = jnp.floor(pc)
    at_edge = low >= (in_dim - 1)
    low = jnp.where(at_edge, float(in_dim - 1), low)
    high = jnp.where(at_edge, float(in_dim - 1), low + 1.0)
    pc = jnp.where(at_edge, low, pc)
    lam = pc - low
    hw = 1.0 - lam
    d = jnp.arange(in_dim, dtype=jnp.float32)[None, None, None, :]
    w = (hw[..., None] * (d == low[..., None]).astype(jnp.float32)
         + lam[..., None] * (d == high[..., None]).astype(jnp.float32))  # [K,P,S,D]
    w = jnp.where(valid[..., None], w, 0.0)
    return w.sum(axis=2) / float(S)                                      # [K,P,D]


def _roi_matrices(rois, spatial_scale, out_size, in_size, sampling_ratio, aligned):
    OH, OW = out_size
    H, W = in_size
    off = 0.5 if aligned else 0.0
    x1 = rois[:, 0] * spatial_scale - off
    y1 = rois[:, 1] * spatial_scale - off
    x2 = rois[:, 2] * spatial_scale - off
    y2 = rois[:, 3] * spatial_scale - off
    rw = x2 - x1
    rh = y2 - y1
    if not aligned:
        rw = jnp.maximum(rw, 1.0)
        rh = jnp.maximum(rh, 1.0)
    if sampling_ratio <= 0:
        # TODO(synk): adaptive sampling_ratio=-1 (per-RoI ceil(roi_size/out) sample
        # counts) needs data-dependent sample grids; only fixed sampling_ratio>0 here.
        raise NotImplementedError("sampling_ratio must be > 0 in this Pallas port")
    ay = _roi_axis_matrix(y1, rh, OH, H, sampling_ratio)     # [K, OH, H]
    ax = _roi_axis_matrix(x1, rw, OW, W, sampling_ratio)     # [K, OW, W]
    return ay, ax


def _map_rois(boxes, ratio, h0):
    """Map per-image boxes (orig-image coords) to network-input coords."""
    rois_rp, counts = [], []
    scale = None
    for dets, meta in zip(boxes, ratio):
        rH, rW = meta['ratio']
        top, left = meta['offset']
        d = dets[:, :4]
        x1 = d[:, 0] * rW + left
        y1 = d[:, 1] * rH + top
        x2 = d[:, 2] * rW + left
        y2 = d[:, 3] * rH + top
        rois_rp.append(jnp.stack([x1, y1, x2, y2], axis=1))
        counts.append(int(d.shape[0]))
        sh0 = int(meta['shape'][0] * rH + 2 * top)
        s_i = float(h0) / float(sh0)
        if scale is None:
            scale = s_i
        else:
            # The reference silently uses the first image's scale; make a mismatch loud.
            assert abs(s_i - scale) < 1e-6, "all images in a batch must share spatial scale"
    rois = (jnp.concatenate(rois_rp, axis=0) if rois_rp
            else jnp.zeros((0, 4), jnp.float32))
    return rois, counts, scale


# -----------------------------------------------------------------------------
# Kernels
# -----------------------------------------------------------------------------
def _roi_combined_kernel(tile_bidx_ref, f_ref, w_ref, o_ref):
    """pooled[(r,oh,ow), c] = sum_{hw} Wgt[(r,oh,ow), hw] * f[hw, c].

    One big MXU matmul (M = R*OH*OW, K = Hl*Wl, N = Ct); lane-dense output,
    no in-kernel reshape or second contraction.  Used for coarse levels."""
    del tile_bidx_ref                      # consumed by the index maps only
    o_ref[0] = jnp.dot(w_ref[0], f_ref[0, 0],
                       preferred_element_type=jnp.float32).astype(o_ref.dtype)


def _roi_separable_kernel(tile_bidx_ref, f_ref, ay_ref, ax_ref, o_ref):
    """pooled[(r,oh), (ow,c)] = sum_{h,w} Ay[(r,oh),h] * f[h,(w,c)] * Ax[r,ow,w]."""
    del tile_bidx_ref                      # consumed by the index maps only
    f2 = f_ref[0, 0]                       # [H, W*Ct]   (compute dtype, e.g. bf16)
    ay = ay_ref[0]                         # [R*OH, H]
    ax = ax_ref[0]                         # [R, OW, W]
    R, OW, W = ax.shape
    RO = ay.shape[0]
    OH = RO // R
    Ct = f2.shape[1] // W
    # H-contraction: one big MXU matmul (M = R*OH rows), f32 accumulation.
    r1 = jnp.dot(ay, f2, preferred_element_type=jnp.float32)         # [RO, W*Ct]
    # Single lane-split relayout (W -> sublanes), consumed by the W-contraction.
    # (Keeping operands in the compute dtype matches the bf16 precision of f.)
    r1 = r1.astype(ax.dtype).reshape(RO, W, Ct)                       # [RO, W, Ct]
    # W-contraction, batched over (RoI, oh).
    # TODO(synk): batch over R only with rhs [R, W, OH*Ct] (N = OH*Ct per MXU
    # instance) once a major<->sublane transpose of r1 lowers reliably in Mosaic.
    ax_b = jnp.broadcast_to(ax[:, None], (R, OH, OW, W)).reshape(RO, OW, W)
    out = jax.lax.dot_general(ax_b, r1, (((2,), (1,)), ((0,), (0,))),
                              preferred_element_type=jnp.float32)     # [RO, OW, Ct]
    # Lane-dense store: flat [RO, OW*Ct] (RO multiple of 8, OW*Ct multiple of 128
    # whenever Ct is) -> no masked partial stores.
    o_ref[0] = out.reshape(RO, OW * Ct).astype(o_ref.dtype)


# -----------------------------------------------------------------------------
# Per-level pallas_call wrappers
# -----------------------------------------------------------------------------
def _run_combined_level(f_flat, wgt_t, tile_bidx, out_dtype, vmem_limit):
    B, nC, HW, ct = f_flat.shape
    T, ROHOW, _ = wgt_t.shape
    grid_spec = pltpu.PrefetchScalarGridSpec(
        num_scalar_prefetch=1,
        grid=(nC, T),                 # T innermost: feature DMA elided per image
        in_specs=[
            pl.BlockSpec((1, 1, HW, ct), lambda c, t, b: (b[t], c, 0, 0)),
            pl.BlockSpec((1, ROHOW, HW), lambda c, t, b: (t, 0, 0)),
        ],
        out_specs=pl.BlockSpec((1, ROHOW, ct), lambda c, t, b: (t, 0, c)),
    )
    return pl.pallas_call(
        _roi_combined_kernel,
        out_shape=jax.ShapeDtypeStruct((T, ROHOW, nC * ct), out_dtype),
        grid_spec=grid_spec,
        compiler_params=pltpu.CompilerParams(
            dimension_semantics=("parallel", "parallel"),
            vmem_limit_bytes=int(vmem_limit)),
    )(tile_bidx, f_flat, wgt_t)


def _run_separable_level(f_lvl, ay_t, ax_t, tile_bidx, out_dtype, vmem_limit):
    B, nC, H, WCt = f_lvl.shape
    T, RO, _ = ay_t.shape
    _, R, OW, W = ax_t.shape
    ct = WCt // W
    grid_spec = pltpu.PrefetchScalarGridSpec(
        num_scalar_prefetch=1,
        grid=(nC, T),                 # T innermost: feature DMA elided per image
        in_specs=[
            pl.BlockSpec((1, 1, H, WCt), lambda c, t, b: (b[t], c, 0, 0)),
            pl.BlockSpec((1, RO, H), lambda c, t, b: (t, 0, 0)),
            pl.BlockSpec((1, R, OW, W), lambda c, t, b: (t, 0, 0, 0)),
        ],
        out_specs=pl.BlockSpec((1, RO, OW * ct), lambda c, t, b: (t, 0, c)),
    )
    return pl.pallas_call(
        _roi_separable_kernel,
        out_shape=jax.ShapeDtypeStruct((T, RO, nC * OW * ct), out_dtype),
        grid_spec=grid_spec,
        compiler_params=pltpu.CompilerParams(
            dimension_semantics=("parallel", "parallel"),
            vmem_limit_bytes=int(vmem_limit)),
    )(tile_bidx, f_lvl, ay_t, ax_t)


# -----------------------------------------------------------------------------
# Generation-aware VMEM / channel-tile heuristics (blocks + in-kernel intermediates)
# -----------------------------------------------------------------------------
def _vmem_capacity_bytes():
    try:
        info = pltpu.get_tpu_info()
        cap = getattr(info, "vmem_capacity_bytes", None)
        if cap:
            return int(cap)
    except Exception:
        pass
    return 64 << 20     # conservative fallback: v7x has 64 MiB/TC (v5e/v6e: 128 MiB)


def _sep_step_bytes(H, W, ct, R, OH, OW, cbytes, obytes):
    blocks = 2 * (H * W * ct * cbytes + R * OH * H * cbytes
                  + R * OW * W * cbytes + R * OH * OW * ct * obytes)
    interm = (R * OH * W * ct * (4 + cbytes)       # f32 dot output + bf16 copy
              + R * OH * OW * W * cbytes           # broadcast ax
              + R * OH * OW * ct * 4)              # f32 W-contraction output
    return blocks + interm


def _comb_step_bytes(HW, ct, R, OH, OW, cbytes, obytes):
    blocks = 2 * (HW * ct * cbytes + R * OH * OW * HW * cbytes
                  + R * OH * OW * ct * obytes)
    interm = R * OH * OW * ct * 4                  # f32 dot output
    return blocks + interm


def _choose_c_tile(C, step_bytes_fn, budget):
    """Full C if it fits (or C<=128); else the largest multiple of 128 in budget."""
    if C <= 128 or step_bytes_fn(C) <= budget:
        return C
    for k in range(C // 128, 0, -1):
        ct = 128 * k
        if step_bytes_fn(ct) <= budget:
            return ct
    return 128


def _vmem_limit(step_bytes, cap):
    return int(min(max(int(step_bytes * 1.3) + (2 << 20), 32 << 20),
                   int(0.9 * cap)))


# -----------------------------------------------------------------------------
# Forward pass (mirrors MultiScaleFusionRoIAlign.forward)
# -----------------------------------------------------------------------------
def multi_scale_fusion_roi_align(x, boxes, ratio, output_size,
                                 sampling_ratio=2, aligned=False,
                                 roi_tile=32, combined_hw_limit=1024,
                                 compute_dtype=jnp.bfloat16):
    """x: list of NCHW feature maps (x[i] exactly 2^i smaller than x[0]);
    boxes: list of [N_i, >=4] per-image boxes (orig-image coords);
    ratio: list of dicts with 'ratio', 'offset', 'shape'.
    roi_tile: RoIs per grid step (keep a multiple of 8; 16 is enough for v5e's
    128-wide MXU, 32 targets the 256-wide MXU of v6e/v7x)."""
    if isinstance(output_size, int):
        output_size = (output_size, output_size)
    output_size = tuple(output_size)
    out_dtype = x[0].dtype
    B, _, H0, W0 = x[0].shape

    # roi_align always runs at the fused (level-0) resolution; output_size==1 means
    # roi_align(7,7) followed by a 7x7 max pool (applied on the pooled output below).
    pool_hw = (7, 7) if output_size[0] == 1 else output_size
    OH, OW = pool_hw

    # ---- boxes -> network-input coords; pad per image into tiles of R RoIs ----
    rois, counts, scale = _map_rois(boxes, ratio, H0)
    R = int(roi_tile)
    pad_counts = [((n + R - 1) // R) * R for n in counts]
    k_pad = int(sum(pad_counts))
    if k_pad == 0:
        c_tot = sum(int(f.shape[1]) for f in x)
        oh, ow = (1, 1) if output_size[0] == 1 else pool_hw
        return [jnp.zeros((0, c_tot, oh, ow), out_dtype) for _ in boxes]

    rois_pad, valid, bidx_pad = [], [], []
    off = 0
    for i, (n, p) in enumerate(zip(counts, pad_counts)):
        rois_pad.append(rois[off:off + n])
        if p > n:
            rois_pad.append(jnp.tile(jnp.array([[0., 0., 1., 1.]], jnp.float32),
                                     (p - n, 1)))
        valid.append(jnp.concatenate([jnp.ones((n,), jnp.float32),
                                      jnp.zeros((p - n,), jnp.float32)]))
        bidx_pad.append(jnp.full((p,), i, jnp.int32))
        off += n
    rois_pad = jnp.concatenate(rois_pad, axis=0)          # [K_pad, 4]
    valid = jnp.concatenate(valid)                        # [K_pad]
    bidx_pad = jnp.concatenate(bidx_pad)                  # [K_pad]
    T = k_pad // R
    tile_bidx = bidx_pad.reshape(T, R)[:, 0]              # tiles never cross images

    # ---- per-RoI roi_align matrices at fused resolution; dummy RoIs zeroed ----
    ay0, ax0 = _roi_matrices(rois_pad, scale, pool_hw, (H0, W0),
                             sampling_ratio, aligned)     # [K_pad,OH,H0],[K_pad,OW,W0]
    ay0 = ay0 * valid[:, None, None]
    ax0 = ax0 * valid[:, None, None]

    cap = _vmem_capacity_bytes()
    budget = int(0.70 * cap)
    cbytes = jnp.dtype(compute_dtype).itemsize
    obytes = jnp.dtype(out_dtype).itemsize
    hi = jax.lax.Precision.HIGHEST

    # ---- per level: fold the upsample into the RoI matrices, pool natively ----
    pooled_levels = []
    for i, feats in enumerate(x):
        Bl, Cl, Hl, Wl = feats.shape
        assert Bl == B and Hl * (2 ** i) == H0 and Wl * (2 ** i) == W0, (
            "level %d must be exactly 2^%d smaller than x[0]" % (i, i))
        if i == 0:
            ay_l, ax_l = ay0, ax0
        else:
            uy = _upsample_matrix(Hl, H0)                 # [H0, Hl]
            ux = _upsample_matrix(Wl, W0)                 # [W0, Wl]
            ay_l = jnp.einsum('kph,hm->kpm', ay0, uy, precision=hi)   # [K_pad,OH,Hl]
            ax_l = jnp.einsum('kqw,wn->kqn', ax0, ux, precision=hi)   # [K_pad,OW,Wl]

        # Cast BEFORE the layout transpose: halves the wrapper-side HBM round trip.
        nhwc = jnp.transpose(feats.astype(compute_dtype), (0, 2, 3, 1))  # [B,H,W,C]
        HW = Hl * Wl

        wgt_bytes = 2 * R * OH * OW * HW * cbytes
        use_combined = (HW <= combined_hw_limit) and (wgt_bytes <= budget // 2)
        if use_combined:
            step_fn = lambda ct: _comb_step_bytes(HW, ct, R, OH, OW, cbytes, obytes)
        else:
            step_fn = lambda ct: _sep_step_bytes(Hl, Wl, ct, R, OH, OW, cbytes, obytes)

        ct = _choose_c_tile(Cl, step_fn, budget)
        Cp = -(-Cl // ct) * ct                            # pad C to a multiple of ct
        nC = Cp // ct
        if Cp != Cl:
            nhwc = jnp.pad(nhwc, ((0, 0), (0, 0), (0, 0), (0, Cp - Cl)))
        vmem_limit = _vmem_limit(step_fn(ct), cap)

        if use_combined:
            # Fold ay (x) ax into one per-RoI weight matrix: one clean MXU matmul
            # per grid step, zero relayouts (coarse levels only; weight is tiny).
            wgt = jnp.einsum('kph,kqw->kpqhw', ay_l, ax_l, precision=hi)
            wgt = wgt.reshape(T, R * OH * OW, HW).astype(compute_dtype)
            f_flat = nhwc.reshape(B, HW, Cp)
            if nC == 1:
                f_flat = f_flat.reshape(B, 1, HW, Cp)
            else:
                f_flat = f_flat.reshape(B, HW, nC, ct).transpose(0, 2, 1, 3)
            pooled = _run_combined_level(f_flat, wgt, tile_bidx, out_dtype, vmem_limit)
            pooled = pooled.reshape(T * R, OH, OW, nC * ct)[..., :Cl]
        else:
            ay_t = ay_l.reshape(T, R * OH, Hl).astype(compute_dtype)
            ax_t = ax_l.reshape(T, R, OW, Wl).astype(compute_dtype)
            if nC == 1:
                f_lvl = nhwc.reshape(B, 1, Hl, Wl * Cp)
            else:
                f_lvl = (nhwc.reshape(B, Hl, Wl, nC, ct)
                         .transpose(0, 3, 1, 2, 4).reshape(B, nC, Hl, Wl * ct))
            pooled = _run_separable_level(f_lvl, ay_t, ax_t, tile_bidx,
                                          out_dtype, vmem_limit)
            pooled = (pooled.reshape(T, R, OH, nC, OW, ct)
                      .transpose(0, 1, 2, 4, 3, 5)
                      .reshape(T * R, OH, OW, nC * ct)[..., :Cl])
        pooled_levels.append(pooled)

    pooled = jnp.concatenate(pooled_levels, axis=-1)      # [K_pad, OH, OW, Ctot]

    # ---- split per image; output_size==1 branch = 7x7 max over the pooled grid ----
    out, off = [], 0
    for n, p in zip(counts, pad_counts):
        block = pooled[off:off + n]                       # [n, OH, OW, Ctot]
        if output_size[0] == 1:
            block = jnp.max(block, axis=(1, 2))[:, :, None, None]    # [n, Ctot, 1, 1]
        else:
            block = jnp.transpose(block, (0, 3, 1, 2))               # [n, Ctot, OH, OW]
        out.append(block)
        off += p
    return out


# -----------------------------------------------------------------------------
# Pure-JAX f32 reference (test only): explicit upsample + concat + roi_align
# -----------------------------------------------------------------------------
def _reference_forward(x, boxes, ratio, output_size, sampling_ratio=2, aligned=False):
    if isinstance(output_size, int):
        output_size = (output_size, output_size)
    B, _, H0, W0 = x[0].shape
    pool_hw = (7, 7) if output_size[0] == 1 else tuple(output_size)
    hi = jax.lax.Precision.HIGHEST
    up = [x[0].astype(jnp.float32)]
    for i, feats in enumerate(x[1:], 1):
        uy = _upsample_matrix(feats.shape[2], H0)
        ux = _upsample_matrix(feats.shape[3], W0)
        up.append(jnp.einsum('hm,bcmn,wn->bchw', uy, feats.astype(jnp.float32), ux,
                             precision=hi))
    batch = jnp.concatenate(up, axis=1)                   # [B, Ctot, H0, W0]
    rois, counts, scale = _map_rois(boxes, ratio, H0)
    bidx = jnp.concatenate([jnp.full((n,), i, jnp.int32)
                            for i, n in enumerate(counts)])
    ay, ax = _roi_matrices(rois, scale, pool_hw, (H0, W0), sampling_ratio, aligned)
    pooled = jnp.einsum('kph,kchw,kqw->kcpq', ay, batch[bidx], ax, precision=hi)
    if output_size[0] == 1:
        pooled = jnp.max(pooled, axis=(2, 3), keepdims=True)
    out, off = [], 0
    for n in counts:
        out.append(pooled[off:off + n])
        off += n
    return out


if __name__ == "__main__":
    key = jax.random.PRNGKey(0)
    k0, k1, k2 = jax.random.split(key, 3)
    B = 2
    # multi-scale feature pyramid (NCHW): 16x16, 8x8, 4x4
    x0 = jax.random.normal(k0, (B, 4, 16, 16), dtype=jnp.float32)
    x1 = jax.random.normal(k1, (B, 4, 8, 8), dtype=jnp.float32)
    x2 = jax.random.normal(k2, (B, 4, 4, 4), dtype=jnp.float32)
    x = [x0, x1, x2]

    # boxes w.r.t. original 64x64 images; network input is 32x32 (ratio 0.5, no pad)
    boxes0 = jnp.array([[4.0, 6.0, 40.0, 50.0],
                        [0.0, 0.0, 63.0, 63.0],
                        [10.0, 20.0, 30.0, 44.0]], dtype=jnp.float32)
    boxes1 = jnp.array([[8.0, 8.0, 56.0, 56.0],
                        [16.0, 4.0, 48.0, 28.0]], dtype=jnp.float32)
    boxes = [boxes0, boxes1]
    ratio = [{'ratio': (0.5, 0.5), 'offset': (0.0, 0.0), 'shape': (64, 64)},
             {'ratio': (0.5, 0.5), 'offset': (0.0, 0.0), 'shape': (64, 64)}]

    refs = _reference_forward(x, boxes, ratio, output_size=7,
                              sampling_ratio=2, aligned=False)

    # 1) default config -> every (small) level takes the fused-weight kernel.
    outs = multi_scale_fusion_roi_align(x, boxes, ratio, output_size=7,
                                        sampling_ratio=2, aligned=False)
    outs = jax.block_until_ready(outs)
    assert outs[0].shape == (3, 12, 7, 7), outs[0].shape
    assert outs[1].shape == (2, 12, 7, 7), outs[1].shape
    for o, r in zip(outs, refs):
        assert bool(jnp.all(jnp.isfinite(o)))
        err = float(jnp.max(jnp.abs(o.astype(jnp.float32) - r)))
        assert err < 0.1, err            # bf16 operands, f32 accumulation

    # 2) force the separable (H-then-W) kernel on every level.
    outs_sep = multi_scale_fusion_roi_align(x, boxes, ratio, output_size=7,
                                            sampling_ratio=2, aligned=False,
                                            combined_hw_limit=0)
    outs_sep = jax.block_until_ready(outs_sep)
    for o, r in zip(outs_sep, refs):
        assert bool(jnp.all(jnp.isfinite(o)))
        err = float(jnp.max(jnp.abs(o.astype(jnp.float32) - r)))
        assert err < 0.1, err

    # 3) output_size == 1 branch: roi_align(7,7) followed by 7x7 max pooling.
    refs1 = _reference_forward(x, boxes, ratio, output_size=1,
                               sampling_ratio=2, aligned=False)
    outs1 = multi_scale_fusion_roi_align(x, boxes, ratio, output_size=1,
                                         sampling_ratio=2, aligned=False)
    outs1 = jax.block_until_ready(outs1)
    assert outs1[0].shape == (3, 12, 1, 1), outs1[0].shape
    assert outs1[1].shape == (2, 12, 1, 1), outs1[1].shape
    for o, r in zip(outs1, refs1):
        assert bool(jnp.all(jnp.isfinite(o)))
        err = float(jnp.max(jnp.abs(o.astype(jnp.float32) - r)))
        assert err < 0.1, err

    print("KERNEL_OK")
</pallas_src>

<mosaic_0001>
module attributes {stable_mosaic.version = 11 : i64} {
  func.func @_roi_combined_kernel(%arg0: i32, %arg1: i32, %arg2: memref<2xi32, #tpu.memory_space<smem>>, %arg3: memref<1x1x256x4xbf16, #tpu.memory_space<vmem>>, %arg4: memref<1x1568x256xbf16, #tpu.memory_space<vmem>>, %arg5: memref<1x1568x4xf32, #tpu.memory_space<vmem>>) attributes {dimension_semantics = [#tpu.dimension_semantics<parallel>, #tpu.dimension_semantics<parallel>], iteration_bounds = array<i64: 1, 2>, scalar_prefetch = 1 : i64, scratch_operands = 0 : i64, tpu.core_type = #tpu.core_type<tc>, window_params = [{transform_indices = @transform_0, window_bounds = array<i64: 1, 1, 256, 4>}, {transform_indices = @transform_1, window_bounds = array<i64: 1, 1568, 256>}, {transform_indices = @transform_2, window_bounds = array<i64: 1, 1568, 4>}]} {
    %c0 = arith.constant 0 : index
    %c0_0 = arith.constant 0 : index
    %c0_1 = arith.constant 0 : index
    %0 = vector.load %arg4[%c0, %c0_0, %c0_1] : memref<1x1568x256xbf16, #tpu.memory_space<vmem>>, vector<1x1568x256xbf16>
    %1 = vector.shape_cast %0 : vector<1x1568x256xbf16> to vector<1568x256xbf16>
    %c0_2 = arith.constant 0 : index
    %c0_3 = arith.constant 0 : index
    %c0_4 = arith.constant 0 : index
    %c0_5 = arith.constant 0 : index
    %2 = vector.load %arg3[%c0_2, %c0_3, %c0_4, %c0_5] : memref<1x1x256x4xbf16, #tpu.memory_space<vmem>>, vector<1x1x256x4xbf16>
    %3 = vector.shape_cast %2 : vector<1x1x256x4xbf16> to vector<256x4xbf16>
    %cst = arith.constant dense<0.000000e+00> : vector<1568x4xf32>
    %4 = tpu.matmul %1, %3, %cst {dimension_numbers = #tpu.dot_dimension_numbers<[1], [0], [0], [1], [0, 0, 1, 1], [], []>} : vector<1568x256xbf16>, vector<256x4xbf16>, vector<1568x4xf32> -> vector<1568x4xf32>
    %c0_6 = arith.constant 0 : index
    %c0_7 = arith.constant 0 : index
    %c0_8 = arith.constant 0 : index
    %5 = vector.load %arg5[%c0_6, %c0_7, %c0_8] : memref<1x1568x4xf32, #tpu.memory_space<vmem>>, vector<1x1568x4xf32>
    %6 = vector.shape_cast %5 : vector<1x1568x4xf32> to vector<1568x4xf32>
    %7 = vector.shape_cast %4 : vector<1568x4xf32> to vector<1x1568x4xf32>
    tpu.vector_store %arg5[%c0_6, %c0_7, %c0_8], %7 {strides = array<i32>} : memref<1x1568x4xf32, #tpu.memory_space<vmem>>, vector<1x1568x4xf32>,
    return
  }
  func.func @transform_0(%arg0: i32, %arg1: i32, %arg2: memref<2xi32, #tpu.memory_space<smem>>) -> (i32, i32, i32, i32) {
    %0 = arith.index_cast %arg1 : i32 to index
    %1 = memref.load %arg2[%0] : memref<2xi32, #tpu.memory_space<smem>>
    %c0_i32 = arith.constant 0 : i32
    %c0_i32_0 = arith.constant 0 : i32
    %c0_i32_1 = arith.constant 0 : i32
    return %1, %arg0, %c0_i32, %c0_i32_0 : i32, i32, i32, i32
  }
  func.func @transform_1(%arg0: i32, %arg1: i32, %arg2: memref<2xi32, #tpu.memory_space<smem>>) -> (i32, i32, i32) {
    %c0_i32 = arith.constant 0 : i32
    %c0_i32_0 = arith.constant 0 : i32
    %c0_i32_1 = arith.constant 0 : i32
    return %arg1, %c0_i32, %c0_i32_0 : i32, i32, i32
  }
  func.func @transform_2(%arg0: i32, %arg1: i32, %arg2: memref<2xi32, #tpu.memory_space<smem>>) -> (i32, i32, i32) {
    %c0_i32 = arith.constant 0 : i32
    %c0_i32_0 = arith.constant 0 : i32
    return %arg1, %c0_i32, %arg0 : i32, i32, i32
  }
}

</mosaic_0001>

<llo_original>
// kernel: tpu_custom_call.1
$region0: #{tpu_custom_call.1}
  #allocation0 [shape = 'u32[]', space=smem, size = 0x4, offset = 0x4, fixed_abs, tag = 'smem constant byte address 0x4 - core index']
  #allocation1 [shape = 'u32[72,128]{1,0:T(1,128)}', space=vmem, size = 0x9000, scoped, tag = 'internal scratch']
  #allocation2 [shape = 's32[1]{0}', space=sflag, size = 0x4, scoped, tag = 'scoped memory for tpu_custom_call.1']
  #allocation3 [shape = 'u8[512]{0}', space=smem, size = 0x200, scoped, tag = 'prefetched SMEM operand 0']
  %s0 = inlined_call_operand.hbm [shape: s32[2], index: 0, kind: input, shape index: {}]
  %s1 = inlined_call_operand.vmem [shape: bf16[2,1,256,4], index: 1, kind: input, shape index: {}]
  %s2 = inlined_call_operand.hbm [shape: bf16[2,1568,256], index: 2, kind: input, shape index: {}]
  %s3 = inlined_call_operand.vmem [shape: f32[2,1568,4], index: 3, kind: output, shape index: {}]
  %s4 = sld [smem:[#allocation0]]
  $region45: #{tpu_custom_call.1} parent=0
    _
  %s6 = ssub.s32 1, %s4
  %s7 = scalar_select 0, %s6, %s4
  %s9 = sshll.u32 %s0, 4
  %s10 = int_to_ptr.hbm [resolvable:$true] %s9
  %12 = dma.hbm_to_smem %s10, 16, [#allocation3], [#allocation2]
  %14 = dma.done [#allocation2], 16
  %15 = sfence
  $region1: #{tpu_custom_call.1} parent=0
    #allocation4 [shape = 'u8[1605632]{0}', space=vmem, size = 0x188000, scoped, tag = 'input window, operand 2']
    #allocation5 [shape = 's32[2]{0}', space=sflag, size = 0x8, scoped, tag = 'scoped memory for tpu_custom_call.1']
    %16 = vsyncpa [#allocation5], 0
    %s17 = scalar_lea.sflag [#allocation5], 1
    %18 = vsyncpa %s17, 0
    loop: start=0, step=1, limit=4
    $region2: #{tpu_custom_call.1} parent=1 // loop_pre_header
      _
    $region3: #{tpu_custom_call.1} parent=1 // loop_header
      %s20 = sphi 0, %s24
      %p21 = scmp.ge.s32.totalorder %s20, 4
      %s27 = sphi 0, %s39
      %s28 = sphi 0, %s35
      %s29 = sphi 0, %s27
      %s30 = sphi 0, %s28
      %s31 = sphi 0, %s29
      %s32 = sphi 0, %s30
      %s46 = sphi 0, %s48
      %s49 = sphi 0, %s46
      %s50 = sphi 0, %s49
      %s66 = sphi 0, %s50
      %s72 = sphi 0, %s74
      %s75 = sphi 0, %s72
      %s76 = sphi 0, %s75
      %s92 = sphi 0, %s76
      %s100 = sphi 0, %s102
      %s103 = sphi 0, %s100
      %s104 = sphi 0, %s103
      %s120 = sphi 0, %s104
    $region4: #{tpu_custom_call.1} parent=1 // loop_header_branch
      %23 = sbr.rel (%p21) target = $region8
    $region5: #{tpu_custom_call.1} parent=1 // loop_body
      %s25 = ssub.s32 %s20, 1
      %s26 = ssub.s32 %s20, 2
      %s33 = sadd.s32 1, %s28
      %p34 = scmp.ge.s32.totalorder %s33, 2
      %s35 = scalar_select %p34, 0, %s33
      %s36 = sadd.s32 1, %s27
      %s37 = scalar_select %p34, %s36, %s27
      %p38 = scmp.ge.s32.totalorder %s37, 1
      %s39 = scalar_select %p38, 0, %s37
      %s40 = sld [smem:[#allocation3 + %s28]]
      %s41 = sld [smem:[#allocation3 + %s35]]
      %s42 = ssub.s32 %s40, %s41
      %s43 = ssub.s32 %s27, %s39
      %s44 = sor.u32 %s42, %s43
      %p45 = scmp.eq.s32.totalorder %s44, 0
      %s47 = sadd.s32 %s46, 1
      %s48 = scalar_select %p45, %s46, %s47
      %p51 = pneg %p45
      %p52 = scmp.eq.s32.totalorder %s20, 1
      %p53 = por %p51, %p52
      %p54 = scmp.ne.s32.totalorder %s46, %s49
      %p55 = scmp.eq.s32.totalorder %s20, 0
      %p56 = por %p54, %p55
      %p57 = scmp.ne.s32.totalorder %s46, %s49
      %p58 = scmp.eq.s32.totalorder %s25, 1
      %p59 = por %p57, %p58
      %p60 = scmp.ne.s32.totalorder %s49, %s50
      %p61 = scmp.eq.s32.totalorder %s25, 0
      %p62 = por %p60, %p61
      %p63 = scmp.ne.s32.totalorder %s49, %s50
      %p64 = scmp.eq.s32.totalorder %s26, 1
      %p65 = por %p63, %p64
      %p67 = scmp.ne.s32.totalorder %s50, %s66
      %p68 = scmp.eq.s32.totalorder %s26, 0
      %p69 = por %p67, %p68
      %s70 = ssub.s32 %s28, %s35
      %p71 = scmp.eq.s32.totalorder %s70, 0
      %s73 = sadd.s32 %s72, 1
      %s74 = scalar_select %p71, %s72, %s73
      %p77 = pneg %p71
      %p78 = scmp.eq.s32.totalorder %s20, 1
      %p79 = por %p77, %p78
      %p80 = scmp.ne.s32.totalorder %s72, %s75
      %p81 = scmp.eq.s32.totalorder %s20, 0
      %p82 = por %p80, %p81
      %p83 = scmp.ne.s32.totalorder %s72, %s75
      %p84 = scmp.eq.s32.totalorder %s25, 1
      %p85 = por %p83, %p84
      %p86 = scmp.ne.s32.totalorder %s75, %s76
      %p87 = scmp.eq.s32.totalorder %s25, 0
      %p88 = por %p86, %p87
      %p89 = scmp.ne.s32.totalorder %s75, %s76
      %p90 = scmp.eq.s32.totalorder %s26, 1
      %p91 = por %p89, %p90
      %p93 = scmp.ne.s32.totalorder %s76, %s92
      %p94 = scmp.eq.s32.totalorder %s26, 0
      %p95 = por %p93, %p94
      %s96 = ssub.s32 %s28, %s35
      %s97 = ssub.s32 %s27, %s39
      %s98 = sor.u32 %s96, %s97
      %p99 = scmp.eq.s32.totalorder %s98, 0
      %s101 = sadd.s32 %s100, 1
      %s102 = scalar_select %p99, %s100, %s101
      %p105 = pneg %p99
      %p106 = scmp.eq.s32.totalorder %s20, 1
      %p107 = por %p105, %p106
      %p108 = scmp.ne.s32.totalorder %s100, %s103
      %p109 = scmp.eq.s32.totalorder %s20, 0
      %p110 = por %p108, %p109
      %p111 = scmp.ne.s32.totalorder %s100, %s103
      %p112 = scmp.eq.s32.totalorder %s25, 1
      %p113 = por %p111, %p112
      %p114 = scmp.ne.s32.totalorder %s103, %s104
      %p115 = scmp.eq.s32.totalorder %s25, 0
      %p116 = por %p114, %p115
      %p117 = scmp.ne.s32.totalorder %s103, %s104
      %p118 = scmp.eq.s32.totalorder %s26, 1
      %p119 = por %p117, %p118
      %p121 = scmp.ne.s32.totalorder %s104, %s120
      %p122 = scmp.eq.s32.totalorder %s26, 0
      %p123 = por %p121, %p122
      %p124 = scmp.le.s32.totalorder 1, %s20
      %p125 = scmp.lt.s32.totalorder %s20, 3
      %p126 = pnand %p124, %p125
      %p127 = pneg %p126
      // Predicated region
      $region9: #{tpu_custom_call.1} parent=5 // pred_check
        _
      $region10: #{tpu_custom_call.1} parent=5 // pred_check_branch
        %129 = sbr.rel (%p126) target = $region12
      $region11: #{tpu_custom_call.1} parent=5 // pred_region
        %s130 = ssub.s32 %s20, 1
      $region12: #{tpu_custom_call.1} parent=5 // pred_fallthru
        _
      %p131 = scmp.lt.s32.totalorder %s20, 2
      // Predicated region
      $region13: #{tpu_custom_call.1} parent=5 // pred_check
        %p132 = pneg %p131
      $region14: #{tpu_custom_call.1} parent=5 // pred_check_branch
        %134 = sbr.rel (%p132) target = $region16
      $region15: #{tpu_custom_call.1} parent=5 // pred_region
        // Predicated region
        $region17: #{tpu_custom_call.1} parent=15 // pred_check
          %p135 = pneg %p56
        $region18: #{tpu_custom_call.1} parent=15 // pred_check_branch
          %137 = sbr.rel (%p135) target = $region20
        $region19: #{tpu_custom_call.1} parent=15 // pred_region
          %s138 = sld [smem:[#allocation3 + %s28]]
          %p139 = scmp.lt.s32.totalorder %s138, 1
          %s140 = scalar_select %p139, %s138, 1
          %p141 = scmp.lt.s32.totalorder %s27, 0
          %s142 = scalar_select %p141, %s27, 0
          %s143 = smul.addr %s142, 32
          %s144 = smul.addr %s140, 32
          %s145 = sadd.s32 %s143, %s144
          %s146 = smul.addr %s145, 4
          %s147 = scalar_lea.vmem %s1, %s146
          %s148 = sld [smem:[#allocation3 + %s28]]
        $region20: #{tpu_custom_call.1} parent=15 // pred_fallthru
          _
        // Predicated region
        $region21: #{tpu_custom_call.1} parent=15 // pred_check
          %p149 = pneg %p82
        $region22: #{tpu_custom_call.1} parent=15 // pred_check_branch
          %151 = sbr.rel (%p149) target = $region24
        $region23: #{tpu_custom_call.1} parent=15 // pred_region
          %s152 = sand.u32 %s72, 1
          %s153 = scalar_lea.sflag [#allocation5], %s152
          %s154 = sand.u32 %s72, 1
          %s155 = smul.addr %s154, 1568
          %s156 = scalar_lea.vmem [#allocation4], %s155
          %158 = vsyncadd %s153, 0
          %s159 = smul.addr %s28, 392
          %s160 = smul.addr %s159, 4
          %s161 = scalar_lea.hbm %s2, %s160
          %s162 = sshll.u32 %s161, 4
          %s163 = int_to_ptr.hbm [resolvable:$true] %s162
          %s164 = sshll.u32 %s156, 4
          %s165 = int_to_ptr.vmem [resolvable:$true] %s164
          %170 = dma.hbm_to_vmem [thread:$0]  %s163, 25088, %s165, %s153, 128, 128, 8
        $region24: #{tpu_custom_call.1} parent=15 // pred_fallthru
          _
      $region16: #{tpu_custom_call.1} parent=5 // pred_fallthru
        _
      %p171 = scmp.le.s32.totalorder 1, %s20
      %p172 = scmp.lt.s32.totalorder %s20, 3
      %p173 = pnand %p171, %p172
      %p174 = pneg %p173
      // Predicated region
      $region25: #{tpu_custom_call.1} parent=5 // pred_check
        _
      $region26: #{tpu_custom_call.1} parent=5 // pred_check_branch
        %176 = sbr.rel (%p173) target = $region28
      $region27: #{tpu_custom_call.1} parent=5 // pred_region
        %s177 = ssub.s32 %s20, 1
        %s178 = sand.u32 %s75, 1
        %s179 = scalar_lea.sflag [#allocation5], %s178
        %s180 = sand.u32 %s75, 1
        %s181 = smul.addr %s180, 1568
        %s182 = scalar_lea.vmem [#allocation4], %s181
        // Predicated region
        $region29: #{tpu_custom_call.1} parent=27 // pred_check
          %p183 = pneg %p88
        $region30: #{tpu_custom_call.1} parent=27 // pred_check_branch
          %185 = sbr.rel (%p183) target = $region32
        $region31: #{tpu_custom_call.1} parent=27 // pred_region
          %187 = dma.done %s179, 25088
        $region32: #{tpu_custom_call.1} parent=27 // pred_fallthru
          _
        %s188 = sld [smem:[#allocation3 + %s30]]
        %p189 = scmp.lt.s32.totalorder %s188, 1
        %s190 = scalar_select %p189, %s188, 1
        %p191 = scmp.lt.s32.totalorder %s29, 0
        %s192 = scalar_select %p191, %s29, 0
        %s193 = smul.addr %s192, 32
        %s194 = smul.addr %s190, 32
        %s195 = sadd.s32 %s193, %s194
        %s196 = smul.addr %s195, 4
        %s197 = scalar_lea.vmem %s1, %s196
        %p198 = pneg %p62
        %p199 = pneg %p59
        %s200 = sand.u32 %s75, 1
        %s201 = scalar_lea.sflag [#allocation5], %s200
        %s202 = sand.u32 %s75, 1
        %s203 = smul.addr %s202, 1568
        %s204 = scalar_lea.vmem [#allocation4], %s203
        %p205 = pneg %p88
        %p206 = pneg %p85
        %p207 = pneg %p116
        %p208 = pneg %p113
        %p209 = scmp.lt.s32.totalorder %s30, 1
        %s210 = scalar_select %p209, %s30, 1
        %p211 = scmp.lt.s32.totalorder %s29, 0
        %s212 = scalar_select %p211, %s29, 0
        %s213 = smul.addr %s210, 196
        %s214 = sadd.s32 %s212, %s213
        %s215 = smul.addr %s214, 8
        %s216 = scalar_lea.vmem %s3, %s215
        %s217 = sld [smem:[#allocation3 + %s30]]
        %p218 = scmp.lt.s32.totalorder %s217, 1
        %s219 = scalar_select %p218, %s217, 1
        %p220 = scmp.lt.s32.totalorder %s29, 0
        %s221 = scalar_select %p220, %s29, 0
        %s222 = smul.addr %s221, 32
        %s223 = smul.addr %s219, 32
        %s224 = sadd.s32 %s222, %s223
        %s225 = smul.addr %s224, 4
        %s226 = scalar_lea.vmem %s1, %s225
        %s227 = sld [smem:[#allocation3 + %s30]]
        %p228 = scmp.lt.s32.totalorder %s30, 1
        %s229 = scalar_select %p228, %s30, 1
        %p230 = scmp.lt.s32.totalorder %s29, 0
        %s231 = scalar_select %p230, %s29, 0
        %s232 = smul.addr %s229, 196
        %s233 = sadd.s32 %s231, %s232
        %s234 = smul.addr %s233, 8
        %s235 = scalar_lea.vmem %s3, %s234
        %v236 = vld [vmem:[%s182] sm:$0xff]
        %v237 = vld [vmem:[%s182 + $0x8] sm:$0xff]
        %v238 = vld [vmem:[%s182 + $0x10] sm:$0xff]
        %v239 = vld [vmem:[%s182 + $0x18] sm:$0xff]
        %v240 = vld [vmem:[%s182 + $0x20] sm:$0xff]
        %v241 = vld [vmem:[%s182 + $0x28] sm:$0xff]
        %v242 = vld [vmem:[%s182 + $0x30] sm:$0xff]
        %v243 = vld [vmem:[%s182 + $0x38] sm:$0xff]
        %v244 = vld [vmem:[%s182 + $0x40] sm:$0xff]
        %v245 = vld [vmem:[%s182 + $0x48] sm:$0xff]
        %v246 = vld [vmem:[%s182 + $0x50] sm:$0xff]
        %v247 = vld [vmem:[%s182 + $0x58] sm:$0xff]
        %v248 = vld [vmem:[%s182 + $0x60] sm:$0xff]
        %v249 = vld [vmem:[%s182 + $0x68] sm:$0xff]
        %v250 = vld [vmem:[%s182 + $0x70] sm:$0xff]
        %v251 = vld [vmem:[%s182 + $0x78] sm:$0xff]
        %v252 = vld [vmem:[%s182 + $0x80] sm:$0xff]
        %v253 = vld [vmem:[%s182 + $0x88] sm:$0xff]
        %v254 = vld [vmem:[%s182 + $0x90] sm:$0xff]
        %v255 = vld [vmem:[%s182 + $0x98] sm:$0xff]
        %v256 = vld [vmem:[%s182 + $0xa0] sm:$0xff]
        %v257 = vld [vmem:[%s182 + $0xa8] sm:$0xff]
        %v258 = vld [vmem:[%s182 + $0xb0] sm:$0xff]
        %v259 = vld [vmem:[%s182 + $0xb8] sm:$0xff]
        %v260 = vld [vmem:[%s182 + $0xc0] sm:$0xff]
        %v261 = vld [vmem:[%s182 + $0xc8] sm:$0xff]
        %v262 = vld [vmem:[%s182 + $0xd0] sm:$0xff]
        %v263 = vld [vmem:[%s182 + $0xd8] sm:$0xff]
        %v264 = vld [vmem:[%s182 + $0xe0] sm:$0xff]
        %v265 = vld [vmem:[%s182 + $0xe8] sm:$0xff]
        %v266 = vld [vmem:[%s182 + $0xf0] sm:$0xff]
        %v267 = vld [vmem:[%s182 + $0xf8] sm:$0xff]
        %v268 = vld [vmem:[%s182 + $0x100] sm:$0xff]
        %v269 = vld [vmem:[%s182 + $0x108] sm:$0xff]
        %v270 = vld [vmem:[%s182 + $0x110] sm:$0xff]
        %v271 = vld [vmem:[%s182 + $0x118] sm:$0xff]
        %v272 = vld [vmem:[%s182 + $0x120] sm:$0xff]
        %v273 = vld [vmem:[%s182 + $0x128] sm:$0xff]
        %v274 = vld [vmem:[%s182 + $0x130] sm:$0xff]
        %v275 = vld [vmem:[%s182 + $0x138] sm:$0xff]
        %v276 = vld [vmem:[%s182 + $0x140] sm:$0xff]
        %v277 = vld [vmem:[%s182 + $0x148] sm:$0xff]
        %v278 = vld [vmem:[%s182 + $0x150] sm:$0xff]
        %v279 = vld [vmem:[%s182 + $0x158] sm:$0xff]
        %v280 = vld [vmem:[%s182 + $0x160] sm:$0xff]
        %v281 = vld [vmem:[%s182 + $0x168] sm:$0xff]
        %v282 = vld [vmem:[%s182 + $0x170] sm:$0xff]
        %v283 = vld [vmem:[%s182 + $0x178] sm:$0xff]
        %v284 = vld [vmem:[%s182 + $0x180] sm:$0xff]
        %v285 = vld [vmem:[%s182 + $0x188] sm:$0xff]
        %v286 = vld [vmem:[%s182 + $0x190] sm:$0xff]
        %v287 = vld [vmem:[%s182 + $0x198] sm:$0xff]
        %v288 = vld [vmem:[%s182 + $0x1a0] sm:$0xff]
        %v289 = vld [vmem:[%s182 + $0x1a8] sm:$0xff]
        %v290 = vld [vmem:[%s182 + $0x1b0] sm:$0xff]
        %v291 = vld [vmem:[%s182 + $0x1b8] sm:$0xff]
        %v292 = vld [vmem:[%s182 + $0x1c0] sm:$0xff]
        %v293 = vld [vmem:[%s182 + $0x1c8] sm:$0xff]
        %v294 = vld [vmem:[%s182 + $0x1d0] sm:$0xff]
        %v295 = vld [vmem:[%s182 + $0x1d8] sm:$0xff]
        %v296 = vld [vmem:[%s182 + $0x1e0] sm:$0xff]
        %v297 = vld [vmem:[%s182 + $0x1e8] sm:$0xff]
        %v298 = vld [vmem:[%s182 + $0x1f0] sm:$0xff]
        %v299 = vld [vmem:[%s182 + $0x1f8] sm:$0xff]
        %v300 = vld [vmem:[%s182 + $0x200] sm:$0xff]
        %v301 = vld [vmem:[%s182 + $0x208] sm:$0xff]
        %v302 = vld [vmem:[%s182 + $0x210] sm:$0xff]
        %v303 = vld [vmem:[%s182 + $0x218] sm:$0xff]
        %v304 = vld [vmem:[%s182 + $0x220] sm:$0xff]
        %v305 = vld [vmem:[%s182 + $0x228] sm:$0xff]
        %v306 = vld [vmem:[%s182 + $0x230] sm:$0xff]
        %v307 = vld [vmem:[%s182 + $0x238] sm:$0xff]
        %v308 = vld [vmem:[%s182 + $0x240] sm:$0xff]
        %v309 = vld [vmem:[%s182 + $0x248] sm:$0xff]
        %v310 = vld [vmem:[%s182 + $0x250] sm:$0xff]
        %v311 = vld [vmem:[%s182 + $0x258] sm:$0xff]
        %v312 = vld [vmem:[%s182 + $0x260] sm:$0xff]
        %v313 = vld [vmem:[%s182 + $0x268] sm:$0xff]
        %v314 = vld [vmem:[%s182 + $0x270] sm:$0xff]
        %v315 = vld [vmem:[%s182 + $0x278] sm:$0xff]
        %v316 = vld [vmem:[%s182 + $0x280] sm:$0xff]
        %v317 = vld [vmem:[%s182 + $0x288] sm:$0xff]
        %v318 = vld [vmem:[%s182 + $0x290] sm:$0xff]
        %v319 = vld [vmem:[%s182 + $0x298] sm:$0xff]
        %v320 = vld [vmem:[%s182 + $0x2a0] sm:$0xff]
        %v321 = vld [vmem:[%s182 + $0x2a8] sm:$0xff]
        %v322 = vld [vmem:[%s182 + $0x2b0] sm:$0xff]
        %v323 = vld [vmem:[%s182 + $0x2b8] sm:$0xff]
        %v324 = vld [vmem:[%s182 + $0x2c0] sm:$0xff]
        %v325 = vld [vmem:[%s182 + $0x2c8] sm:$0xff]
        %v326 = vld [vmem:[%s182 + $0x2d0] sm:$0xff]
        %v327 = vld [vmem:[%s182 + $0x2d8] sm:$0xff]
        %v328 = vld [vmem:[%s182 + $0x2e0] sm:$0xff]
        %v329 = vld [vmem:[%s182 + $0x2e8] sm:$0xff]
        %v330 = vld [vmem:[%s182 + $0x2f0] sm:$0xff]
        %v331 = vld [vmem:[%s182 + $0x2f8] sm:$0xff]
        %v332 = vld [vmem:[%s182 + $0x300] sm:$0xff]
        %v333 = vld [vmem:[%s182 + $0x308] sm:$0xff]
        %v334 = vld [vmem:[%s182 + $0x310] sm:$0xff]
        %v335 = vld [vmem:[%s182 + $0x318] sm:$0xff]
        %v336 = vld [vmem:[%s182 + $0x320] sm:$0xff]
        %v337 = vld [vmem:[%s182 + $0x328] sm:$0xff]
        %v338 = vld [vmem:[%s182 + $0x330] sm:$0xff]
        %v339 = vld [vmem:[%s182 + $0x338] sm:$0xff]
        %v340 = vld [vmem:[%s182 + $0x340] sm:$0xff]
        %v341 = vld [vmem:[%s182 + $0x348] sm:$0xff]
        %v342 = vld [vmem:[%s182 + $0x350] sm:$0xff]
        %v343 = vld [vmem:[%s182 + $0x358] sm:$0xff]
        %v344 = vld [vmem:[%s182 + $0x360] sm:$0xff]
        %v345 = vld [vmem:[%s182 + $0x368] sm:$0xff]
        %v346 = vld [vmem:[%s182 + $0x370] sm:$0xff]
        %v347 = vld [vmem:[%s182 + $0x378] sm:$0xff]
        %v348 = vld [vmem:[%s182 + $0x380] sm:$0xff]
        %v349 = vld [vmem:[%s182 + $0x388] sm:$0xff]
        %v350 = vld [vmem:[%s182 + $0x390] sm:$0xff]
        %v351 = vld [vmem:[%s182 + $0x398] sm:$0xff]
        %v352 = vld [vmem:[%s182 + $0x3a0] sm:$0xff]
        %v353 = vld [vmem:[%s182 + $0x3a8] sm:$0xff]
        %v354 = vld [vmem:[%s182 + $0x3b0] sm:$0xff]
        %v355 = vld [vmem:[%s182 + $0x3b8] sm:$0xff]
        %v356 = vld [vmem:[%s182 + $0x3c0] sm:$0xff]
        %v357 = vld [vmem:[%s182 + $0x3c8] sm:$0xff]
        %v358 = vld [vmem:[%s182 + $0x3d0] sm:$0xff]
        %v359 = vld [vmem:[%s182 + $0x3d8] sm:$0xff]
        %v360 = vld [vmem:[%s182 + $0x3e0] sm:$0xff]
        %v361 = vld [vmem:[%s182 + $0x3e8] sm:$0xff]
        %v362 = vld [vmem:[%s182 + $0x3f0] sm:$0xff]
        %v363 = vld [vmem:[%s182 + $0x3f8] sm:$0xff]
        %v364 = vld [vmem:[%s182 + $0x400] sm:$0xff]
        %v365 = vld [vmem:[%s182 + $0x408] sm:$0xff]
        %v366 = vld [vmem:[%s182 + $0x410] sm:$0xff]
        %v367 = vld [vmem:[%s182 + $0x418] sm:$0xff]
        %v368 = vld [vmem:[%s182 + $0x420] sm:$0xff]
        %v369 = vld [vmem:[%s182 + $0x428] sm:$0xff]
        %v370 = vld [vmem:[%s182 + $0x430] sm:$0xff]
        %v371 = vld [vmem:[%s182 + $0x438] sm:$0xff]
        %v372 = vld [vmem:[%s182 + $0x440] sm:$0xff]
        %v373 = vld [vmem:[%s182 + $0x448] sm:$0xff]
        %v374 = vld [vmem:[%s182 + $0x450] sm:$0xff]
        %v375 = vld [vmem:[%s182 + $0x458] sm:$0xff]
        %v376 = vld [vmem:[%s182 + $0x460] sm:$0xff]
        %v377 = vld [vmem:[%s182 + $0x468] sm:$0xff]
        %v378 = vld [vmem:[%s182 + $0x470] sm:$0xff]
        %v379 = vld [vmem:[%s182 + $0x478] sm:$0xff]
        %v380 = vld [vmem:[%s182 + $0x480] sm:$0xff]
        %v381 = vld [vmem:[%s182 + $0x488] sm:$0xff]
        %v382 = vld [vmem:[%s182 + $0x490] sm:$0xff]
        %v383 = vld [vmem:[%s182 + $0x498] sm:$0xff]
        %v384 = vld [vmem:[%s182 + $0x4a0] sm:$0xff]
        %v385 = vld [vmem:[%s182 + $0x4a8] sm:$0xff]
        %v386 = vld [vmem:[%s182 + $0x4b0] sm:$0xff]
        %v387 = vld [vmem:[%s182 + $0x4b8] sm:$0xff]
        %v388 = vld [vmem:[%s182 + $0x4c0] sm:$0xff]
        %v389 = vld [vmem:[%s182 + $0x4c8] sm:$0xff]
        %v390 = vld [vmem:[%s182 + $0x4d0] sm:$0xff]
        %v391 = vld [vmem:[%s182 + $0x4d8] sm:$0xff]
        %v392 = vld [vmem:[%s182 + $0x4e0] sm:$0xff]
        %v393 = vld [vmem:[%s182 + $0x4e8] sm:$0xff]
        %v394 = vld [vmem:[%s182 + $0x4f0] sm:$0xff]
        %v395 = vld [vmem:[%s182 + $0x4f8] sm:$0xff]
        %v396 = vld [vmem:[%s182 + $0x500] sm:$0xff]
        %v397 = vld [vmem:[%s182 + $0x508] sm:$0xff]
        %v398 = vld [vmem:[%s182 + $0x510] sm:$0xff]
        %v399 = vld [vmem:[%s182 + $0x518] sm:$0xff]
        %v400 = vld [vmem:[%s182 + $0x520] sm:$0xff]
        %v401 = vld [vmem:[%s182 + $0x528] sm:$0xff]
        %v402 = vld [vmem:[%s182 + $0x530] sm:$0xff]
        %v403 = vld [vmem:[%s182 + $0x538] sm:$0xff]
        %v404 = vld [vmem:[%s182 + $0x540] sm:$0xff]
        %v405 = vld [vmem:[%s182 + $0x548] sm:$0xff]
        %v406 = vld [vmem:[%s182 + $0x550] sm:$0xff]
        %v407 = vld [vmem:[%s182 + $0x558] sm:$0xff]
        %v408 = vld [vmem:[%s182 + $0x560] sm:$0xff]
        %v409 = vld [vmem:[%s182 + $0x568] sm:$0xff]
        %v410 = vld [vmem:[%s182 + $0x570] sm:$0xff]
        %v411 = vld [vmem:[%s182 + $0x578] sm:$0xff]
        %v412 = vld [vmem:[%s182 + $0x580] sm:$0xff]
        %v413 = vld [vmem:[%s182 + $0x588] sm:$0xff]
        %v414 = vld [vmem:[%s182 + $0x590] sm:$0xff]
        %v415 = vld [vmem:[%s182 + $0x598] sm:$0xff]
        %v416 = vld [vmem:[%s182 + $0x5a0] sm:$0xff]
        %v417 = vld [vmem:[%s182 + $0x5a8] sm:$0xff]
        %v418 = vld [vmem:[%s182 + $0x5b0] sm:$0xff]
        %v419 = vld [vmem:[%s182 + $0x5b8] sm:$0xff]
        %v420 = vld [vmem:[%s182 + $0x5c0] sm:$0xff]
        %v421 = vld [vmem:[%s182 + $0x5c8] sm:$0xff]
        %v422 = vld [vmem:[%s182 + $0x5d0] sm:$0xff]
        %v423 = vld [vmem:[%s182 + $0x5d8] sm:$0xff]
        %v424 = vld [vmem:[%s182 + $0x5e0] sm:$0xff]
        %v425 = vld [vmem:[%s182 + $0x5e8] sm:$0xff]
        %v426 = vld [vmem:[%s182 + $0x5f0] sm:$0xff]
        %v427 = vld [vmem:[%s182 + $0x5f8] sm:$0xff]
        %v428 = vld [vmem:[%s182 + $0x600] sm:$0xff]
        %v429 = vld [vmem:[%s182 + $0x608] sm:$0xff]
        %v430 = vld [vmem:[%s182 + $0x610] sm:$0xff]
        %v431 = vld [vmem:[%s182 + $0x618] sm:$0xff]
        %v432 = vld [vmem:[%s226] sm:$0xf]
        %v433 = vld [vmem:[%s226 + $0x4] sm:$0xf]
        %v434 = vld [vmem:[%s226 + $0x8] sm:$0xf]
        %v435 = vld [vmem:[%s226 + $0xc] sm:$0xf]
        %v436 = vld [vmem:[%s226 + $0x10] sm:$0xf]
        %v437 = vld [vmem:[%s226 + $0x14] sm:$0xf]
        %v438 = vld [vmem:[%s226 + $0x18] sm:$0xf]
        %v439 = vld [vmem:[%s226 + $0x1c] sm:$0xf]
        %v440 = vld [vmem:[%s226 + $0x20] sm:$0xf]
        %v441 = vld [vmem:[%s226 + $0x24] sm:$0xf]
        %v442 = vld [vmem:[%s226 + $0x28] sm:$0xf]
        %v443 = vld [vmem:[%s226 + $0x2c] sm:$0xf]
        %v444 = vld [vmem:[%s226 + $0x30] sm:$0xf]
        %v445 = vld [vmem:[%s226 + $0x34] sm:$0xf]
        %v446 = vld [vmem:[%s226 + $0x38] sm:$0xf]
        %v447 = vld [vmem:[%s226 + $0x3c] sm:$0xf]
        %v448 = vld [vmem:[%s226 + $0x40] sm:$0xf]
        %v449 = vld [vmem:[%s226 + $0x44] sm:$0xf]
        %v450 = vld [vmem:[%s226 + $0x48] sm:$0xf]
        %v451 = vld [vmem:[%s226 + $0x4c] sm:$0xf]
        %v452 = vld [vmem:[%s226 + $0x50] sm:$0xf]
        %v453 = vld [vmem:[%s226 + $0x54] sm:$0xf]
        %v454 = vld [vmem:[%s226 + $0x58] sm:$0xf]
        %v455 = vld [vmem:[%s226 + $0x5c] sm:$0xf]
        %v456 = vld [vmem:[%s226 + $0x60] sm:$0xf]
        %v457 = vld [vmem:[%s226 + $0x64] sm:$0xf]
        %v458 = vld [vmem:[%s226 + $0x68] sm:$0xf]
        %v459 = vld [vmem:[%s226 + $0x6c] sm:$0xf]
        %v460 = vld [vmem:[%s226 + $0x70] sm:$0xf]
        %v461 = vld [vmem:[%s226 + $0x74] sm:$0xf]
        %v462 = vld [vmem:[%s226 + $0x78] sm:$0xf]
        %v463 = vld [vmem:[%s226 + $0x7c] sm:$0xf]
        %v660 = vunpack.c.l.b16 %v236
        %v661 = vunpack.c.h.b16 %v236
        %v662 = vunpack.c.l.b16 %v237
        %v663 = vunpack.c.h.b16 %v237
        %v664 = vunpack.c.l.b16 %v238
        %v665 = vunpack.c.h.b16 %v238
        %v666 = vunpack.c.l.b16 %v239
        %v667 = vunpack.c.h.b16 %v239
        %v668 = vunpack.c.l.b16 %v240
        %v669 = vunpack.c.h.b16 %v240
        %v670 = vunpack.c.l.b16 %v241
        %v671 = vunpack.c.h.b16 %v241
        %v672 = vunpack.c.l.b16 %v242
        %v673 = vunpack.c.h.b16 %v242
        %v674 = vunpack.c.l.b16 %v243
        %v675 = vunpack.c.h.b16 %v243
        %v676 = vunpack.c.l.b16 %v244
        %v677 = vunpack.c.h.b16 %v244
        %v678 = vunpack.c.l.b16 %v245
        %v679 = vunpack.c.h.b16 %v245
        %v680 = vunpack.c.l.b16 %v246
        %v681 = vunpack.c.h.b16 %v246
        %v682 = vunpack.c.l.b16 %v247
        %v683 = vunpack.c.h.b16 %v247
        %v684 = vunpack.c.l.b16 %v248
        %v685 = vunpack.c.h.b16 %v248
        %v686 = vunpack.c.l.b16 %v249
        %v687 = vunpack.c.h.b16 %v249
        %v688 = vunpack.c.l.b16 %v250
        %v689 = vunpack.c.h.b16 %v250
        %v690 = vunpack.c.l.b16 %v251
        %v691 = vunpack.c.h.b16 %v251
        %v692 = vunpack.c.l.b16 %v252
        %v693 = vunpack.c.h.b16 %v252
        %v694 = vunpack.c.l.b16 %v253
        %v695 = vunpack.c.h.b16 %v253
        %v696 = vunpack.c.l.b16 %v254
        %v697 = vunpack.c.h.b16 %v254
        %v698 = vunpack.c.l.b16 %v255
        %v699 = vunpack.c.h.b16 %v255
        %v700 = vunpack.c.l.b16 %v256
        %v701 = vunpack.c.h.b16 %v256
        %v702 = vunpack.c.l.b16 %v257
        %v703 = vunpack.c.h.b16 %v257
        %v704 = vunpack.c.l.b16 %v258
        %v705 = vunpack.c.h.b16 %v258
        %v706 = vunpack.c.l.b16 %v259
        %v707 = vunpack.c.h.b16 %v259
        %v708 = vunpack.c.l.b16 %v260
        %v709 = vunpack.c.h.b16 %v260
        %v710 = vunpack.c.l.b16 %v261
        %v711 = vunpack.c.h.b16 %v261
        %v712 = vunpack.c.l.b16 %v262
        %v713 = vunpack.c.h.b16 %v262
        %v714 = vunpack.c.l.b16 %v263
        %v715 = vunpack.c.h.b16 %v263
        %v716 = vunpack.c.l.b16 %v264
        %v717 = vunpack.c.h.b16 %v264
        %v718 = vunpack.c.l.b16 %v265
        %v719 = vunpack.c.h.b16 %v265
        %v720 = vunpack.c.l.b16 %v266
        %v721 = vunpack.c.h.b16 %v266
        %v722 = vunpack.c.l.b16 %v267
        %v723 = vunpack.c.h.b16 %v267
        %v724 = vunpack.c.l.b16 %v268
        %v725 = vunpack.c.h.b16 %v268
        %v726 = vunpack.c.l.b16 %v269
        %v727 = vunpack.c.h.b16 %v269
        %v728 = vunpack.c.l.b16 %v270
        %v729 = vunpack.c.h.b16 %v270
        %v730 = vunpack.c.l.b16 %v271
        %v731 = vunpack.c.h.b16 %v271
        %v732 = vunpack.c.l.b16 %v272
        %v733 = vunpack.c.h.b16 %v272
        %v734 = vunpack.c.l.b16 %v273
        %v735 = vunpack.c.h.b16 %v273
        %v736 = vunpack.c.l.b16 %v274
        %v737 = vunpack.c.h.b16 %v274
        %v738 = vunpack.c.l.b16 %v275
        %v739 = vunpack.c.h.b16 %v275
        %v740 = vunpack.c.l.b16 %v276
        %v741 = vunpack.c.h.b16 %v276
        %v742 = vunpack.c.l.b16 %v277
        %v743 = vunpack.c.h.b16 %v277
        %v744 = vunpack.c.l.b16 %v278
        %v745 = vunpack.c.h.b16 %v278
        %v746 = vunpack.c.l.b16 %v279
        %v747 = vunpack.c.h.b16 %v279
        %v748 = vunpack.c.l.b16 %v280
        %v749 = vunpack.c.h.b16 %v280
        %v750 = vunpack.c.l.b16 %v281
        %v751 = vunpack.c.h.b16 %v281
        %v752 = vunpack.c.l.b16 %v282
        %v753 = vunpack.c.h.b16 %v282
        %v754 = vunpack.c.l.b16 %v283
        %v755 = vunpack.c.h.b16 %v283
        %v756 = vunpack.c.l.b16 %v284
        %v757 = vunpack.c.h.b16 %v284
        %v758 = vunpack.c.l.b16 %v285
        %v759 = vunpack.c.h.b16 %v285
        %v760 = vunpack.c.l.b16 %v286
        %v761 = vunpack.c.h.b16 %v286
        %v762 = vunpack.c.l.b16 %v287
        %v763 = vunpack.c.h.b16 %v287
        %v764 = vunpack.c.l.b16 %v288
        %v765 = vunpack.c.h.b16 %v288
        %v766 = vunpack.c.l.b16 %v289
        %v767 = vunpack.c.h.b16 %v289
        %v768 = vunpack.c.l.b16 %v290
        %v769 = vunpack.c.h.b16 %v290
        %v770 = vunpack.c.l.b16 %v291
        %v771 = vunpack.c.h.b16 %v291
        %v772 = vunpack.c.l.b16 %v292
        %v773 = vunpack.c.h.b16 %v292
        %v774 = vunpack.c.l.b16 %v293
        %v775 = vunpack.c.h.b16 %v293
        %v776 = vunpack.c.l.b16 %v294
        %v777 = vunpack.c.h.b16 %v294
        %v778 = vunpack.c.l.b16 %v295
        %v779 = vunpack.c.h.b16 %v295
        %v780 = vunpack.c.l.b16 %v296
        %v781 = vunpack.c.h.b16 %v296
        %v782 = vunpack.c.l.b16 %v297
        %v783 = vunpack.c.h.b16 %v297
        %v784 = vunpack.c.l.b16 %v298
        %v785 = vunpack.c.h.b16 %v298
        %v786 = vunpack.c.l.b16 %v299
        %v787 = vunpack.c.h.b16 %v299
        %v788 = vunpack.c.l.b16 %v300
        %v789 = vunpack.c.h.b16 %v300
        %v790 = vunpack.c.l.b16 %v301
        %v791 = vunpack.c.h.b16 %v301
        %v792 = vunpack.c.l.b16 %v302
        %v793 = vunpack.c.h.b16 %v302
        %v794 = vunpack.c.l.b16 %v303
        %v795 = vunpack.c.h.b16 %v303
        %v796 = vunpack.c.l.b16 %v304
        %v797 = vunpack.c.h.b16 %v304
        %v798 = vunpack.c.l.b16 %v305
        %v799 = vunpack.c.h.b16 %v305
        %v800 = vunpack.c.l.b16 %v306
        %v801 = vunpack.c.h.b16 %v306
        %v802 = vunpack.c.l.b16 %v307
        %v803 = vunpack.c.h.b16 %v307
        %v804 = vunpack.c.l.b16 %v308
        %v805 = vunpack.c.h.b16 %v308
        %v806 = vunpack.c.l.b16 %v309
        %v807 = vunpack.c.h.b16 %v309
        %v808 = vunpack.c.l.b16 %v310
        %v809 = vunpack.c.h.b16 %v310
        %v810 = vunpack.c.l.b16 %v311
        %v811 = vunpack.c.h.b16 %v311
        %v812 = vunpack.c.l.b16 %v312
        %v813 = vunpack.c.h.b16 %v312
        %v814 = vunpack.c.l.b16 %v313
        %v815 = vunpack.c.h.b16 %v313
        %v816 = vunpack.c.l.b16 %v314
        %v817 = vunpack.c.h.b16 %v314
        %v818 = vunpack.c.l.b16 %v315
        %v819 = vunpack.c.h.b16 %v315
        %v820 = vunpack.c.l.b16 %v316
        %v821 = vunpack.c.h.b16 %v316
        %v822 = vunpack.c.l.b16 %v317
        %v823 = vunpack.c.h.b16 %v317
        %v824 = vunpack.c.l.b16 %v318
        %v825 = vunpack.c.h.b16 %v318
        %v826 = vunpack.c.l.b16 %v319
        %v827 = vunpack.c.h.b16 %v319
        %v828 = vunpack.c.l.b16 %v320
        %v829 = vunpack.c.h.b16 %v320
        %v830 = vunpack.c.l.b16 %v321
        %v831 = vunpack.c.h.b16 %v321
        %v832 = vunpack.c.l.b16 %v322
        %v833 = vunpack.c.h.b16 %v322
        %v834 = vunpack.c.l.b16 %v323
        %v835 = vunpack.c.h.b16 %v323
        %v836 = vunpack.c.l.b16 %v324
        %v837 = vunpack.c.h.b16 %v324
        %v838 = vunpack.c.l.b16 %v325
        %v839 = vunpack.c.h.b16 %v325
        %v840 = vunpack.c.l.b16 %v326
        %v841 = vunpack.c.h.b16 %v326
        %v842 = vunpack.c.l.b16 %v327
        %v843 = vunpack.c.h.b16 %v327
        %v844 = vunpack.c.l.b16 %v328
        %v845 = vunpack.c.h.b16 %v328
        %v846 = vunpack.c.l.b16 %v329
        %v847 = vunpack.c.h.b16 %v329
        %v848 = vunpack.c.l.b16 %v330
        %v849 = vunpack.c.h.b16 %v330
        %v850 = vunpack.c.l.b16 %v331
        %v851 = vunpack.c.h.b16 %v331
        %v852 = vunpack.c.l.b16 %v332
        %v853 = vunpack.c.h.b16 %v332
        %v854 = vunpack.c.l.b16 %v333
        %v855 = vunpack.c.h.b16 %v333
        %v856 = vunpack.c.l.b16 %v334
        %v857 = vunpack.c.h.b16 %v334
        %v858 = vunpack.c.l.b16 %v335
        %v859 = vunpack.c.h.b16 %v335
        %v860 = vunpack.c.l.b16 %v336
        %v861 = vunpack.c.h.b16 %v336
        %v862 = vunpack.c.l.b16 %v337
        %v863 = vunpack.c.h.b16 %v337
        %v864 = vunpack.c.l.b16 %v338
        %v865 = vunpack.c.h.b16 %v338
        %v866 = vunpack.c.l.b16 %v339
        %v867 = vunpack.c.h.b16 %v339
        %v868 = vunpack.c.l.b16 %v340
        %v869 = vunpack.c.h.b16 %v340
        %v870 = vunpack.c.l.b16 %v341
        %v871 = vunpack.c.h.b16 %v341
        %v872 = vunpack.c.l.b16 %v342
        %v873 = vunpack.c.h.b16 %v342
        %v874 = vunpack.c.l.b16 %v343
        %v875 = vunpack.c.h.b16 %v343
        %v876 = vunpack.c.l.b16 %v344
        %v877 = vunpack.c.h.b16 %v344
        %v878 = vunpack.c.l.b16 %v345
        %v879 = vunpack.c.h.b16 %v345
        %v880 = vunpack.c.l.b16 %v346
        %v881 = vunpack.c.h.b16 %v346
        %v882 = vunpack.c.l.b16 %v347
        %v883 = vunpack.c.h.b16 %v347
        %v884 = vunpack.c.l.b16 %v348
        %v885 = vunpack.c.h.b16 %v348
        %v886 = vunpack.c.l.b16 %v349
        %v887 = vunpack.c.h.b16 %v349
        %v888 = vunpack.c.l.b16 %v350
        %v889 = vunpack.c.h.b16 %v350
        %v890 = vunpack.c.l.b16 %v351
        %v891 = vunpack.c.h.b16 %v351
        %v892 = vunpack.c.l.b16 %v352
        %v893 = vunpack.c.h.b16 %v352
        %v894 = vunpack.c.l.b16 %v353
        %v895 = vunpack.c.h.b16 %v353
        %v896 = vunpack.c.l.b16 %v354
        %v897 = vunpack.c.h.b16 %v354
        %v898 = vunpack.c.l.b16 %v355
        %v899 = vunpack.c.h.b16 %v355
        %v900 = vunpack.c.l.b16 %v356
        %v901 = vunpack.c.h.b16 %v356
        %v902 = vunpack.c.l.b16 %v357
        %v903 = vunpack.c.h.b16 %v357
        %v904 = vunpack.c.l.b16 %v358
        %v905 = vunpack.c.h.b16 %v358
        %v906 = vunpack.c.l.b16 %v359
        %v907 = vunpack.c.h.b16 %v359
        %v908 = vunpack.c.l.b16 %v360
        %v909 = vunpack.c.h.b16 %v360
        %v910 = vunpack.c.l.b16 %v361
        %v911 = vunpack.c.h.b16 %v361
        %v912 = vunpack.c.l.b16 %v362
        %v913 = vunpack.c.h.b16 %v362
        %v914 = vunpack.c.l.b16 %v363
        %v915 = vunpack.c.h.b16 %v363
        %v916 = vunpack.c.l.b16 %v364
        %v917 = vunpack.c.h.b16 %v364
        %v918 = vunpack.c.l.b16 %v365
        %v919 = vunpack.c.h.b16 %v365
        %v920 = vunpack.c.l.b16 %v366
        %v921 = vunpack.c.h.b16 %v366
        %v922 = vunpack.c.l.b16 %v367
        %v923 = vunpack.c.h.b16 %v367
        %v924 = vunpack.c.l.b16 %v368
        %v925 = vunpack.c.h.b16 %v368
        %v926 = vunpack.c.l.b16 %v369
        %v927 = vunpack.c.h.b16 %v369
        %v928 = vunpack.c.l.b16 %v370
        %v929 = vunpack.c.h.b16 %v370
        %v930 = vunpack.c.l.b16 %v371
        %v931 = vunpack.c.h.b16 %v371
        %v932 = vunpack.c.l.b16 %v372
        %v933 = vunpack.c.h.b16 %v372
        %v934 = vunpack.c.l.b16 %v373
        %v935 = vunpack.c.h.b16 %v373
        %v936 = vunpack.c.l.b16 %v374
        %v937 = vunpack.c.h.b16 %v374
        %v938 = vunpack.c.l.b16 %v375
        %v939 = vunpack.c.h.b16 %v375
        %v940 = vunpack.c.l.b16 %v376
        %v941 = vunpack.c.h.b16 %v376
        %v942 = vunpack.c.l.b16 %v377
        %v943 = vunpack.c.h.b16 %v377
        %v944 = vunpack.c.l.b16 %v378
        %v945 = vunpack.c.h.b16 %v378
        %v946 = vunpack.c.l.b16 %v379
        %v947 = vunpack.c.h.b16 %v379
        %v948 = vunpack.c.l.b16 %v380
        %v949 = vunpack.c.h.b16 %v380
        %v950 = vunpack.c.l.b16 %v381
        %v951 = vunpack.c.h.b16 %v381
        %v952 = vunpack.c.l.b16 %v382
        %v953 = vunpack.c.h.b16 %v382
        %v954 = vunpack.c.l.b16 %v383
        %v955 = vunpack.c.h.b16 %v383
        %v956 = vunpack.c.l.b16 %v384
        %v957 = vunpack.c.h.b16 %v384
        %v958 = vunpack.c.l.b16 %v385
        %v959 = vunpack.c.h.b16 %v385
        %v960 = vunpack.c.l.b16 %v386
        %v961 = vunpack.c.h.b16 %v386
        %v962 = vunpack.c.l.b16 %v387
        %v963 = vunpack.c.h.b16 %v387
        %v964 = vunpack.c.l.b16 %v388
        %v965 = vunpack.c.h.b16 %v388
        %v966 = vunpack.c.l.b16 %v389
        %v967 = vunpack.c.h.b16 %v389
        %v968 = vunpack.c.l.b16 %v390
        %v969 = vunpack.c.h.b16 %v390
        %v970 = vunpack.c.l.b16 %v391
        %v971 = vunpack.c.h.b16 %v391
        %v972 = vunpack.c.l.b16 %v392
        %v973 = vunpack.c.h.b16 %v392
        %v974 = vunpack.c.l.b16 %v393
        %v975 = vunpack.c.h.b16 %v393
        %v976 = vunpack.c.l.b16 %v394
        %v977 = vunpack.c.h.b16 %v394
        %v978 = vunpack.c.l.b16 %v395
        %v979 = vunpack.c.h.b16 %v395
        %v980 = vunpack.c.l.b16 %v396
        %v981 = vunpack.c.h.b16 %v396
        %v982 = vunpack.c.l.b16 %v397
        %v983 = vunpack.c.h.b16 %v397
        %v984 = vunpack.c.l.b16 %v398
        %v985 = vunpack.c.h.b16 %v398
        %v986 = vunpack.c.l.b16 %v399
        %v987 = vunpack.c.h.b16 %v399
        %v988 = vunpack.c.l.b16 %v400
        %v989 = vunpack.c.h.b16 %v400
        %v990 = vunpack.c.l.b16 %v401
        %v991 = vunpack.c.h.b16 %v401
        %v992 = vunpack.c.l.b16 %v402
        %v993 = vunpack.c.h.b16 %v402
        %v994 = vunpack.c.l.b16 %v403
        %v995 = vunpack.c.h.b16 %v403
        %v996 = vunpack.c.l.b16 %v404
        %v997 = vunpack.c.h.b16 %v404
        %v998 = vunpack.c.l.b16 %v405
        %v999 = vunpack.c.h.b16 %v405
        %v1000 = vunpack.c.l.b16 %v406
        %v1001 = vunpack.c.h.b16 %v406
        %v1002 = vunpack.c.l.b16 %v407
        %v1003 = vunpack.c.h.b16 %v407
        %v1004 = vunpack.c.l.b16 %v408
        %v1005 = vunpack.c.h.b16 %v408
        %v1006 = vunpack.c.l.b16 %v409
        %v1007 = vunpack.c.h.b16 %v409
        %v1008 = vunpack.c.l.b16 %v410
        %v1009 = vunpack.c.h.b16 %v410
        %v1010 = vunpack.c.l.b16 %v411
        %v1011 = vunpack.c.h.b16 %v411
        %v1012 = vunpack.c.l.b16 %v412
        %v1013 = vunpack.c.h.b16 %v412
        %v1014 = vunpack.c.l.b16 %v413
        %v1015 = vunpack.c.h.b16 %v413
        %v1016 = vunpack.c.l.b16 %v414
        %v1017 = vunpack.c.h.b16 %v414
        %v1018 = vunpack.c.l.b16 %v415
        %v1019 = vunpack.c.h.b16 %v415
        %v1020 = vunpack.c.l.b16 %v416
        %v1021 = vunpack.c.h.b16 %v416
        %v1022 = vunpack.c.l.b16 %v417
        %v1023 = vunpack.c.h.b16 %v417
        %v1024 = vunpack.c.l.b16 %v418
        %v1025 = vunpack.c.h.b16 %v418
        %v1026 = vunpack.c.l.b16 %v419
        %v1027 = vunpack.c.h.b16 %v419
        %v1028 = vunpack.c.l.b16 %v420
        %v1029 = vunpack.c.h.b16 %v420
        %v1030 = vunpack.c.l.b16 %v421
        %v1031 = vunpack.c.h.b16 %v421
        %v1032 = vunpack.c.l.b16 %v422
        %v1033 = vunpack.c.h.b16 %v422
        %v1034 = vunpack.c.l.b16 %v423
        %v1035 = vunpack.c.h.b16 %v423
        %v1036 = vunpack.c.l.b16 %v424
        %v1037 = vunpack.c.h.b16 %v424
        %v1038 = vunpack.c.l.b16 %v425
        %v1039 = vunpack.c.h.b16 %v425
        %v1040 = vunpack.c.l.b16 %v426
        %v1041 = vunpack.c.h.b16 %v426
        %v1042 = vunpack.c.l.b16 %v427
        %v1043 = vunpack.c.h.b16 %v427
        %v1044 = vunpack.c.l.b16 %v428
        %v1045 = vunpack.c.h.b16 %v428
        %v1046 = vunpack.c.l.b16 %v429
        %v1047 = vunpack.c.h.b16 %v429
        %v1048 = vunpack.c.l.b16 %v430
        %v1049 = vunpack.c.h.b16 %v430
        %v1050 = vunpack.c.l.b16 %v431
        %v1051 = vunpack.c.h.b16 %v431
        %v1052 = vpack.c.b16 %v662, %v660
        %v1053 = vpack.c.b16 %v663, %v661
        %v1054 = vpack.c.b16 %v666, %v664
        %v1055 = vpack.c.b16 %v667, %v665
        %v1056 = vpack.c.b16 %v670, %v668
        %v1057 = vpack.c.b16 %v671, %v669
        %v1058 = vpack.c.b16 %v674, %v672
        %v1059 = vpack.c.b16 %v675, %v673
        %v1060 = vpack.c.b16 %v678, %v676
        %v1061 = vpack.c.b16 %v679, %v677
        %v1062 = vpack.c.b16 %v682, %v680
        %v1063 = vpack.c.b16 %v683, %v681
        %v1064 = vpack.c.b16 %v686, %v684
        %v1065 = vpack.c.b16 %v687, %v685
        %v1066 = vpack.c.b16 %v690, %v688
        %v1067 = vpack.c.b16 %v691, %v689
        %v1068 = vpack.c.b16 %v694, %v692
        %v1069 = vpack.c.b16 %v695, %v693
        %v1070 = vpack.c.b16 %v698, %v696
        %v1071 = vpack.c.b16 %v699, %v697
        %v1072 = vpack.c.b16 %v702, %v700
        %v1073 = vpack.c.b16 %v703, %v701
        %v1074 = vpack.c.b16 %v706, %v704
        %v1075 = vpack.c.b16 %v707, %v705
        %v1076 = vpack.c.b16 %v710, %v708
        %v1077 = vpack.c.b16 %v711, %v709
        %v1078 = vpack.c.b16 %v714, %v712
        %v1079 = vpack.c.b16 %v715, %v713
        %v1080 = vpack.c.b16 %v718, %v716
        %v1081 = vpack.c.b16 %v719, %v717
        %v1082 = vpack.c.b16 %v722, %v720
        %v1083 = vpack.c.b16 %v723, %v721
        %v1084 = vpack.c.b16 %v726, %v724
        %v1085 = vpack.c.b16 %v727, %v725
        %v1086 = vpack.c.b16 %v730, %v728
        %v1087 = vpack.c.b16 %v731, %v729
        %v1088 = vpack.c.b16 %v734, %v732
        %v1089 = vpack.c.b16 %v735, %v733
        %v1090 = vpack.c.b16 %v738, %v736
        %v1091 = vpack.c.b16 %v739, %v737
        %v1092 = vpack.c.b16 %v742, %v740
        %v1093 = vpack.c.b16 %v743, %v741
        %v1094 = vpack.c.b16 %v746, %v744
        %v1095 = vpack.c.b16 %v747, %v745
        %v1096 = vpack.c.b16 %v750, %v748
        %v1097 = vpack.c.b16 %v751, %v749
        %v1098 = vpack.c.b16 %v754, %v752
        %v1099 = vpack.c.b16 %v755, %v753
        %v1100 = vpack.c.b16 %v758, %v756
        %v1101 = vpack.c.b16 %v759, %v757
        %v1102 = vpack.c.b16 %v762, %v760
        %v1103 = vpack.c.b16 %v763, %v761
        %v1104 = vpack.c.b16 %v766, %v764
        %v1105 = vpack.c.b16 %v767, %v765
        %v1106 = vpack.c.b16 %v770, %v768
        %v1107 = vpack.c.b16 %v771, %v769
        %v1108 = vpack.c.b16 %v774, %v772
        %v1109 = vpack.c.b16 %v775, %v773
        %v1110 = vpack.c.b16 %v778, %v776
        %v1111 = vpack.c.b16 %v779, %v777
        %v1112 = vpack.c.b16 %v782, %v780
        %v1113 = vpack.c.b16 %v783, %v781
        %v1114 = vpack.c.b16 %v786, %v784
        %v1115 = vpack.c.b16 %v787, %v785
        %v1116 = vpack.c.b16 %v790, %v788
        %v1117 = vpack.c.b16 %v791, %v789
        %v1118 = vpack.c.b16 %v794, %v792
        %v1119 = vpack.c.b16 %v795, %v793
        %v1120 = vpack.c.b16 %v798, %v796
        %v1121 = vpack.c.b16 %v799, %v797
        %v1122 = vpack.c.b16 %v802, %v800
        %v1123 = vpack.c.b16 %v803, %v801
        %v1124 = vpack.c.b16 %v806, %v804
        %v1125 = vpack.c.b16 %v807, %v805
        %v1126 = vpack.c.b16 %v810, %v808
        %v1127 = vpack.c.b16 %v811, %v809
        %v1128 = vpack.c.b16 %v814, %v812
        %v1129 = vpack.c.b16 %v815, %v813
        %v1130 = vpack.c.b16 %v818, %v816
        %v1131 = vpack.c.b16 %v819, %v817
        %v1132 = vpack.c.b16 %v822, %v820
        %v1133 = vpack.c.b16 %v823, %v821
        %v1134 = vpack.c.b16 %v826, %v824
        %v1135 = vpack.c.b16 %v827, %v825
        %v1136 = vpack.c.b16 %v830, %v828
        %v1137 = vpack.c.b16 %v831, %v829
        %v1138 = vpack.c.b16 %v834, %v832
        %v1139 = vpack.c.b16 %v835, %v833
        %v1140 = vpack.c.b16 %v838, %v836
        %v1141 = vpack.c.b16 %v839, %v837
        %v1142 = vpack.c.b16 %v842, %v840
        %v1143 = vpack.c.b16 %v843, %v841
        %v1144 = vpack.c.b16 %v846, %v844
        %v1145 = vpack.c.b16 %v847, %v845
        %v1146 = vpack.c.b16 %v850, %v848
        %v1147 = vpack.c.b16 %v851, %v849
        %v1148 = vpack.c.b16 %v854, %v852
        %v1149 = vpack.c.b16 %v855, %v853
        %v1150 = vpack.c.b16 %v858, %v856
        %v1151 = vpack.c.b16 %v859, %v857
        %v1152 = vpack.c.b16 %v862, %v860
        %v1153 = vpack.c.b16 %v863, %v861
        %v1154 = vpack.c.b16 %v866, %v864
        %v1155 = vpack.c.b16 %v867, %v865
        %v1156 = vpack.c.b16 %v870, %v868
        %v1157 = vpack.c.b16 %v871, %v869
        %v1158 = vpack.c.b16 %v874, %v872
        %v1159 = vpack.c.b16 %v875, %v873
        %v1160 = vpack.c.b16 %v878, %v876
        %v1161 = vpack.c.b16 %v879, %v877
        %v1162 = vpack.c.b16 %v882, %v880
        %v1163 = vpack.c.b16 %v883, %v881
        %v1164 = vpack.c.b16 %v886, %v884
        %v1165 = vpack.c.b16 %v887, %v885
        %v1166 = vpack.c.b16 %v890, %v888
        %v1167 = vpack.c.b16 %v891, %v889
        %v1168 = vpack.c.b16 %v894, %v892
        %v1169 = vpack.c.b16 %v895, %v893
        %v1170 = vpack.c.b16 %v898, %v896
        %v1171 = vpack.c.b16 %v899, %v897
        %v1172 = vpack.c.b16 %v902, %v900
        %v1173 = vpack.c.b16 %v903, %v901
        %v1174 = vpack.c.b16 %v906, %v904
        %v1175 = vpack.c.b16 %v907, %v905
        %v1176 = vpack.c.b16 %v910, %v908
        %v1177 = vpack.c.b16 %v911, %v909
        %v1178 = vpack.c.b16 %v914, %v912
        %v1179 = vpack.c.b16 %v915, %v913
        %v1180 = vpack.c.b16 %v918, %v916
        %v1181 = vpack.c.b16 %v919, %v917
        %v1182 = vpack.c.b16 %v922, %v920
        %v1183 = vpack.c.b16 %v923, %v921
        %v1184 = vpack.c.b16 %v926, %v924
        %v1185 = vpack.c.b16 %v927, %v925
        %v1186 = vpack.c.b16 %v930, %v928
        %v1187 = vpack.c.b16 %v931, %v929
        %v1188 = vpack.c.b16 %v934, %v932
        %v1189 = vpack.c.b16 %v935, %v933
        %v1190 = vpack.c.b16 %v938, %v936
        %v1191 = vpack.c.b16 %v939, %v937
        %v1192 = vpack.c.b16 %v942, %v940
        %v1193 = vpack.c.b16 %v943, %v941
        %v1194 = vpack.c.b16 %v946, %v944
        %v1195 = vpack.c.b16 %v947, %v945
        %v1196 = vpack.c.b16 %v950, %v948
        %v1197 = vpack.c.b16 %v951, %v949
        %v1198 = vpack.c.b16 %v954, %v952
        %v1199 = vpack.c.b16 %v955, %v953
        %v1200 = vpack.c.b16 %v958, %v956
        %v1201 = vpack.c.b16 %v959, %v957
        %v1202 = vpack.c.b16 %v962, %v960
        %v1203 = vpack.c.b16 %v963, %v961
        %v1204 = vpack.c.b16 %v966, %v964
        %v1205 = vpack.c.b16 %v967, %v965
        %v1206 = vpack.c.b16 %v970, %v968
        %v1207 = vpack.c.b16 %v971, %v969
        %v1208 = vpack.c.b16 %v974, %v972
        %v1209 = vpack.c.b16 %v975, %v973
        %v1210 = vpack.c.b16 %v978, %v976
        %v1211 = vpack.c.b16 %v979, %v977
        %v1212 = vpack.c.b16 %v982, %v980
        %v1213 = vpack.c.b16 %v983, %v981
        %v1214 = vpack.c.b16 %v986, %v984
        %v1215 = vpack.c.b16 %v987, %v985
        %v1216 = vpack.c.b16 %v990, %v988
        %v1217 = vpack.c.b16 %v991, %v989
        %v1218 = vpack.c.b16 %v994, %v992
        %v1219 = vpack.c.b16 %v995, %v993
        %v1220 = vpack.c.b16 %v998, %v996
        %v1221 = vpack.c.b16 %v999, %v997
        %v1222 = vpack.c.b16 %v1002, %v1000
        %v1223 = vpack.c.b16 %v1003, %v1001
        %v1224 = vpack.c.b16 %v1006, %v1004
        %v1225 = vpack.c.b16 %v1007, %v1005
        %v1226 = vpack.c.b16 %v1010, %v1008
        %v1227 = vpack.c.b16 %v1011, %v1009
        %v1228 = vpack.c.b16 %v1014, %v1012
        %v1229 = vpack.c.b16 %v1015, %v1013
        %v1230 = vpack.c.b16 %v1018, %v1016
        %v1231 = vpack.c.b16 %v1019, %v1017
        %v1232 = vpack.c.b16 %v1022, %v1020
        %v1233 = vpack.c.b16 %v1023, %v1021
        %v1234 = vpack.c.b16 %v1026, %v1024
        %v1235 = vpack.c.b16 %v1027, %v1025
        %v1236 = vpack.c.b16 %v1030, %v1028
        %v1237 = vpack.c.b16 %v1031, %v1029
        %v1238 = vpack.c.b16 %v1034, %v1032
        %v1239 = vpack.c.b16 %v1035, %v1033
        %v1240 = vpack.c.b16 %v1038, %v1036
        %v1241 = vpack.c.b16 %v1039, %v1037
        %v1242 = vpack.c.b16 %v1042, %v1040
        %v1243 = vpack.c.b16 %v1043, %v1041
        %v1244 = vpack.c.b16 %v1046, %v1044
        %v1245 = vpack.c.b16 %v1047, %v1045
        %v1246 = vpack.c.b16 %v1050, %v1048
        %v1247 = vpack.c.b16 %v1051, %v1049
        %v1476 = vunpack.c.l.b16 %v432
        %v1477 = vunpack.c.l.b16 %v433
        %v1478 = vunpack.c.l.b16 %v434
        %v1479 = vunpack.c.l.b16 %v435
        %v1480 = vunpack.c.l.b16 %v436
        %v1481 = vunpack.c.l.b16 %v437
        %v1482 = vunpack.c.l.b16 %v438
        %v1483 = vunpack.c.l.b16 %v439
        %v1484 = vunpack.c.l.b16 %v440
        %v1485 = vunpack.c.l.b16 %v441
        %v1486 = vunpack.c.l.b16 %v442
        %v1487 = vunpack.c.l.b16 %v443
        %v1488 = vunpack.c.l.b16 %v444
        %v1489 = vunpack.c.l.b16 %v445
        %v1490 = vunpack.c.l.b16 %v446
        %v1491 = vunpack.c.l.b16 %v447
        %v1492 = vunpack.c.l.b16 %v448
        %v1493 = vunpack.c.l.b16 %v449
        %v1494 = vunpack.c.l.b16 %v450
        %v1495 = vunpack.c.l.b16 %v451
        %v1496 = vunpack.c.l.b16 %v452
        %v1497 = vunpack.c.l.b16 %v453
        %v1498 = vunpack.c.l.b16 %v454
        %v1499 = vunpack.c.l.b16 %v455
        %v1500 = vunpack.c.l.b16 %v456
        %v1501 = vunpack.c.l.b16 %v457
        %v1502 = vunpack.c.l.b16 %v458
        %v1503 = vunpack.c.l.b16 %v459
        %v1504 = vunpack.c.l.b16 %v460
        %v1505 = vunpack.c.l.b16 %v461
        %v1506 = vunpack.c.l.b16 %v462
        %v1507 = vunpack.c.l.b16 %v463
        %v1508 = vpack.c.b16 %v1477, %v1476
        %v1509 = vpack.c.b16 %v1479, %v1478
        %v1510 = vpack.c.b16 %v1481, %v1480
        %v1511 = vpack.c.b16 %v1483, %v1482
        %v1512 = vpack.c.b16 %v1485, %v1484
        %v1513 = vpack.c.b16 %v1487, %v1486
        %v1514 = vpack.c.b16 %v1489, %v1488
        %v1515 = vpack.c.b16 %v1491, %v1490
        %v1516 = vpack.c.b16 %v1493, %v1492
        %v1517 = vpack.c.b16 %v1495, %v1494
        %v1518 = vpack.c.b16 %v1497, %v1496
        %v1519 = vpack.c.b16 %v1499, %v1498
        %v1520 = vpack.c.b16 %v1501, %v1500
        %v1521 = vpack.c.b16 %v1503, %v1502
        %v1522 = vpack.c.b16 %v1505, %v1504
        %v1523 = vpack.c.b16 %v1507, %v1506
        %1540 = vmatpush.bf16.msra.mxu0 %v1515
        %1541 = vmatpush.bf16.msra.mxu0 %v1514
        %1542 = vmatpush.bf16.msra.mxu0 %v1513
        %1543 = vmatpush.bf16.msra.mxu0 %v1512
        %1544 = vmatpush.bf16.msra.mxu0 %v1511
        %1545 = vmatpush.bf16.msra.mxu0 %v1510
        %1546 = vmatpush.bf16.msra.mxu0 %v1509
        %1547 = vmatpush.bf16.msra.mxu0 %v1508
        %1548 = vmatmul.bf16.gmra.mxu0 %v1052
        %v1549 = vpop.f32.mrf.mxu0
        %v1550 = vadd.f32 0.0, %v1549
        %v1551 = vpop.f32.mrf.mxu0
        %v1552 = vadd.f32 0.0, %v1551
        %1553 = vmatmul.bf16.gmra.mxu0 %v1054
        %v1554 = vpop.f32.mrf.mxu0
        %v1555 = vadd.f32 0.0, %v1554
        %v1556 = vpop.f32.mrf.mxu0
        %v1557 = vadd.f32 0.0, %v1556
        %1558 = vmatmul.bf16.gmra.mxu0 %v1056
        %v1559 = vpop.f32.mrf.mxu0
        %v1560 = vadd.f32 0.0, %v1559
        %v1561 = vpop.f32.mrf.mxu0
        %v1562 = vadd.f32 0.0, %v1561
        %1563 = vmatmul.bf16.gmra.mxu0 %v1058
        %v1564 = vpop.f32.mrf.mxu0
        %v1565 = vadd.f32 0.0, %v1564
        %v1566 = vpop.f32.mrf.mxu0
        %v1567 = vadd.f32 0.0, %v1566
        %1568 = vmatmul.bf16.gmra.mxu0 %v1060
        %v1569 = vpop.f32.mrf.mxu0
        %v1570 = vadd.f32 0.0, %v1569
        %v1571 = vpop.f32.mrf.mxu0
        %v1572 = vadd.f32 0.0, %v1571
        %1573 = vmatmul.bf16.gmra.mxu0 %v1062
        %v1574 = vpop.f32.mrf.mxu0
        %v1575 = vadd.f32 0.0, %v1574
        %v1576 = vpop.f32.mrf.mxu0
        %v1577 = vadd.f32 0.0, %v1576
        %1578 = vmatmul.bf16.gmra.mxu0 %v1064
        %v1579 = vpop.f32.mrf.mxu0
        %v1580 = vadd.f32 0.0, %v1579
        %v1581 = vpop.f32.mrf.mxu0
        %v1582 = vadd.f32 0.0, %v1581
        %1583 = vmatmul.bf16.gmra.mxu0 %v1066
        %v1584 = vpop.f32.mrf.mxu0
        %v1585 = vadd.f32 0.0, %v1584
        %v1586 = vpop.f32.mrf.mxu0
        %v1587 = vadd.f32 0.0, %v1586
        %1588 = vmatmul.bf16.gmra.mxu0 %v1068
        %v1589 = vpop.f32.mrf.mxu0
        %v1590 = vadd.f32 0.0, %v1589
        %v1591 = vpop.f32.mrf.mxu0
        %v1592 = vadd.f32 0.0, %v1591
        %1593 = vmatmul.bf16.gmra.mxu0 %v1070
        %v1594 = vpop.f32.mrf.mxu0
        %v1595 = vadd.f32 0.0, %v1594
        %v1596 = vpop.f32.mrf.mxu0
        %v1597 = vadd.f32 0.0, %v1596
        %1598 = vmatmul.bf16.gmra.mxu0 %v1072
        %v1599 = vpop.f32.mrf.mxu0
        %v1600 = vadd.f32 0.0, %v1599
        %v1601 = vpop.f32.mrf.mxu0
        %v1602 = vadd.f32 0.0, %v1601
        %1603 = vmatmul.bf16.gmra.mxu0 %v1074
        %v1604 = vpop.f32.mrf.mxu0
        %v1605 = vadd.f32 0.0, %v1604
        %v1606 = vpop.f32.mrf.mxu0
        %v1607 = vadd.f32 0.0, %v1606
        %1608 = vmatmul.bf16.gmra.mxu0 %v1076
        %v1609 = vpop.f32.mrf.mxu0
        %v1610 = vadd.f32 0.0, %v1609
        %v1611 = vpop.f32.mrf.mxu0
        %v1612 = vadd.f32 0.0, %v1611
        %1613 = vmatmul.bf16.gmra.mxu0 %v1078
        %v1614 = vpop.f32.mrf.mxu0
        %v1615 = vadd.f32 0.0, %v1614
        %v1616 = vpop.f32.mrf.mxu0
        %v1617 = vadd.f32 0.0, %v1616
        %1618 = vmatmul.bf16.gmra.mxu0 %v1080
        %v1619 = vpop.f32.mrf.mxu0
        %v1620 = vadd.f32 0.0, %v1619
        %v1621 = vpop.f32.mrf.mxu0
        %v1622 = vadd.f32 0.0, %v1621
        %1623 = vmatmul.bf16.gmra.mxu0 %v1082
        %v1624 = vpop.f32.mrf.mxu0
        %v1625 = vadd.f32 0.0, %v1624
        %v1626 = vpop.f32.mrf.mxu0
        %v1627 = vadd.f32 0.0, %v1626
        %1628 = vmatmul.bf16.gmra.mxu0 %v1084
        %v1629 = vpop.f32.mrf.mxu0
        %v1630 = vadd.f32 0.0, %v1629
        %v1631 = vpop.f32.mrf.mxu0
        %v1632 = vadd.f32 0.0, %v1631
        %1633 = vmatmul.bf16.gmra.mxu0 %v1086
        %v1634 = vpop.f32.mrf.mxu0
        %v1635 = vadd.f32 0.0, %v1634
        %v1636 = vpop.f32.mrf.mxu0
        %v1637 = vadd.f32 0.0, %v1636
        %1638 = vmatmul.bf16.gmra.mxu0 %v1088
        %v1639 = vpop.f32.mrf.mxu0
        %v1640 = vadd.f32 0.0, %v1639
        %v1641 = vpop.f32.mrf.mxu0
        %v1642 = vadd.f32 0.0, %v1641
        %1643 = vmatmul.bf16.gmra.mxu0 %v1090
        %v1644 = vpop.f32.mrf.mxu0
        %v1645 = vadd.f32 0.0, %v1644
        %v1646 = vpop.f32.mrf.mxu0
        %v1647 = vadd.f32 0.0, %v1646
        %1648 = vmatmul.bf16.gmra.mxu0 %v1092
        %v1649 = vpop.f32.mrf.mxu0
        %v1650 = vadd.f32 0.0, %v1649
        %v1651 = vpop.f32.mrf.mxu0
        %v1652 = vadd.f32 0.0, %v1651
        %1653 = vmatmul.bf16.gmra.mxu0 %v1094
        %v1654 = vpop.f32.mrf.mxu0
        %v1655 = vadd.f32 0.0, %v1654
        %v1656 = vpop.f32.mrf.mxu0
        %v1657 = vadd.f32 0.0, %v1656
        %1658 = vmatmul.bf16.gmra.mxu0 %v1096
        %v1659 = vpop.f32.mrf.mxu0
        %v1660 = vadd.f32 0.0, %v1659
        %v1661 = vpop.f32.mrf.mxu0
        %v1662 = vadd.f32 0.0, %v1661
        %1663 = vmatmul.bf16.gmra.mxu0 %v1098
        %v1664 = vpop.f32.mrf.mxu0
        %v1665 = vadd.f32 0.0, %v1664
        %v1666 = vpop.f32.mrf.mxu0
        %v1667 = vadd.f32 0.0, %v1666
        %1668 = vmatmul.bf16.gmra.mxu0 %v1100
        %v1669 = vpop.f32.mrf.mxu0
        %v1670 = vadd.f32 0.0, %v1669
        %v1671 = vpop.f32.mrf.mxu0
        %v1672 = vadd.f32 0.0, %v1671
        %1673 = vmatmul.bf16.gmra.mxu0 %v1102
        %v1674 = vpop.f32.mrf.mxu0
        %v1675 = vadd.f32 0.0, %v1674
        %v1676 = vpop.f32.mrf.mxu0
        %v1677 = vadd.f32 0.0, %v1676
        %1678 = vmatmul.bf16.gmra.mxu0 %v1104
        %v1679 = vpop.f32.mrf.mxu0
        %v1680 = vadd.f32 0.0, %v1679
        %v1681 = vpop.f32.mrf.mxu0
        %v1682 = vadd.f32 0.0, %v1681
        %1683 = vmatmul.bf16.gmra.mxu0 %v1106
        %v1684 = vpop.f32.mrf.mxu0
        %v1685 = vadd.f32 0.0, %v1684
        %v1686 = vpop.f32.mrf.mxu0
        %v1687 = vadd.f32 0.0, %v1686
        %1688 = vmatmul.bf16.gmra.mxu0 %v1108
        %v1689 = vpop.f32.mrf.mxu0
        %v1690 = vadd.f32 0.0, %v1689
        %v1691 = vpop.f32.mrf.mxu0
        %v1692 = vadd.f32 0.0, %v1691
        %1693 = vmatmul.bf16.gmra.mxu0 %v1110
        %v1694 = vpop.f32.mrf.mxu0
        %v1695 = vadd.f32 0.0, %v1694
        %v1696 = vpop.f32.mrf.mxu0
        %v1697 = vadd.f32 0.0, %v1696
        %1698 = vmatmul.bf16.gmra.mxu0 %v1112
        %v1699 = vpop.f32.mrf.mxu0
        %v1700 = vadd.f32 0.0, %v1699
        %v1701 = vpop.f32.mrf.mxu0
        %v1702 = vadd.f32 0.0, %v1701
        %1703 = vmatmul.bf16.gmra.mxu0 %v1114
        %v1704 = vpop.f32.mrf.mxu0
        %v1705 = vadd.f32 0.0, %v1704
        %v1706 = vpop.f32.mrf.mxu0
        %v1707 = vadd.f32 0.0, %v1706
        %1708 = vmatmul.bf16.gmra.mxu0 %v1116
        %v1709 = vpop.f32.mrf.mxu0
        %v1710 = vadd.f32 0.0, %v1709
        %v1711 = vpop.f32.mrf.mxu0
        %v1712 = vadd.f32 0.0, %v1711
        %1713 = vmatmul.bf16.gmra.mxu0 %v1118
        %v1714 = vpop.f32.mrf.mxu0
        %v1715 = vadd.f32 0.0, %v1714
        %v1716 = vpop.f32.mrf.mxu0
        %v1717 = vadd.f32 0.0, %v1716
        %1718 = vmatmul.bf16.gmra.mxu0 %v1120
        %v1719 = vpop.f32.mrf.mxu0
        %v1720 = vadd.f32 0.0, %v1719
        %v1721 = vpop.f32.mrf.mxu0
        %v1722 = vadd.f32 0.0, %v1721
        %1723 = vmatmul.bf16.gmra.mxu0 %v1122
        %v1724 = vpop.f32.mrf.mxu0
        %v1725 = vadd.f32 0.0, %v1724
        %v1726 = vpop.f32.mrf.mxu0
        %v1727 = vadd.f32 0.0, %v1726
        %1728 = vmatmul.bf16.gmra.mxu0 %v1124
        %v1729 = vpop.f32.mrf.mxu0
        %v1730 = vadd.f32 0.0, %v1729
        %v1731 = vpop.f32.mrf.mxu0
        %v1732 = vadd.f32 0.0, %v1731
        %1733 = vmatmul.bf16.gmra.mxu0 %v1126
        %v1734 = vpop.f32.mrf.mxu0
        %v1735 = vadd.f32 0.0, %v1734
        %v1736 = vpop.f32.mrf.mxu0
        %v1737 = vadd.f32 0.0, %v1736
        %1738 = vmatmul.bf16.gmra.mxu0 %v1128
        %v1739 = vpop.f32.mrf.mxu0
        %v1740 = vadd.f32 0.0, %v1739
        %v1741 = vpop.f32.mrf.mxu0
        %v1742 = vadd.f32 0.0, %v1741
        %1743 = vmatmul.bf16.gmra.mxu0 %v1130
        %v1744 = vpop.f32.mrf.mxu0
        %v1745 = vadd.f32 0.0, %v1744
        %v1746 = vpop.f32.mrf.mxu0
        %v1747 = vadd.f32 0.0, %v1746
        %1748 = vmatmul.bf16.gmra.mxu0 %v1132
        %v1749 = vpop.f32.mrf.mxu0
        %v1750 = vadd.f32 0.0, %v1749
        %v1751 = vpop.f32.mrf.mxu0
        %v1752 = vadd.f32 0.0, %v1751
        %1753 = vmatmul.bf16.gmra.mxu0 %v1134
        %v1754 = vpop.f32.mrf.mxu0
        %v1755 = vadd.f32 0.0, %v1754
        %v1756 = vpop.f32.mrf.mxu0
        %v1757 = vadd.f32 0.0, %v1756
        %1758 = vmatmul.bf16.gmra.mxu0 %v1136
        %v1759 = vpop.f32.mrf.mxu0
        %v1760 = vadd.f32 0.0, %v1759
        %v1761 = vpop.f32.mrf.mxu0
        %v1762 = vadd.f32 0.0, %v1761
        %1763 = vmatmul.bf16.gmra.mxu0 %v1138
        %v1764 = vpop.f32.mrf.mxu0
        %v1765 = vadd.f32 0.0, %v1764
        %v1766 = vpop.f32.mrf.mxu0
        %v1767 = vadd.f32 0.0, %v1766
        %1768 = vmatmul.bf16.gmra.mxu0 %v1140
        %v1769 = vpop.f32.mrf.mxu0
        %v1770 = vadd.f32 0.0, %v1769
        %v1771 = vpop.f32.mrf.mxu0
        %v1772 = vadd.f32 0.0, %v1771
        %1773 = vmatmul.bf16.gmra.mxu0 %v1142
        %v1774 = vpop.f32.mrf.mxu0
        %v1775 = vadd.f32 0.0, %v1774
        %v1776 = vpop.f32.mrf.mxu0
        %v1777 = vadd.f32 0.0, %v1776
        %1778 = vmatmul.bf16.gmra.mxu0 %v1144
        %v1779 = vpop.f32.mrf.mxu0
        %v1780 = vadd.f32 0.0, %v1779
        %v1781 = vpop.f32.mrf.mxu0
        %v1782 = vadd.f32 0.0, %v1781
        %1783 = vmatmul.bf16.gmra.mxu0 %v1146
        %v1784 = vpop.f32.mrf.mxu0
        %v1785 = vadd.f32 0.0, %v1784
        %v1786 = vpop.f32.mrf.mxu0
        %v1787 = vadd.f32 0.0, %v1786
        %1788 = vmatmul.bf16.gmra.mxu0 %v1148
        %v1789 = vpop.f32.mrf.mxu0
        %v1790 = vadd.f32 0.0, %v1789
        %v1791 = vpop.f32.mrf.mxu0
        %v1792 = vadd.f32 0.0, %v1791
        %1793 = vmatmul.bf16.gmra.mxu0 %v1150
        %v1794 = vpop.f32.mrf.mxu0
        %v1795 = vadd.f32 0.0, %v1794
        %v1796 = vpop.f32.mrf.mxu0
        %v1797 = vadd.f32 0.0, %v1796
        %1798 = vmatmul.bf16.gmra.mxu0 %v1152
        %v1799 = vpop.f32.mrf.mxu0
        %v1800 = vadd.f32 0.0, %v1799
        %v1801 = vpop.f32.mrf.mxu0
        %v1802 = vadd.f32 0.0, %v1801
        %1803 = vmatmul.bf16.gmra.mxu0 %v1154
        %v1804 = vpop.f32.mrf.mxu0
        %v1805 = vadd.f32 0.0, %v1804
        %v1806 = vpop.f32.mrf.mxu0
        %v1807 = vadd.f32 0.0, %v1806
        %1808 = vmatmul.bf16.gmra.mxu0 %v1156
        %v1809 = vpop.f32.mrf.mxu0
        %v1810 = vadd.f32 0.0, %v1809
        %v1811 = vpop.f32.mrf.mxu0
        %v1812 = vadd.f32 0.0, %v1811
        %1813 = vmatmul.bf16.gmra.mxu0 %v1158
        %v1814 = vpop.f32.mrf.mxu0
        %v1815 = vadd.f32 0.0, %v1814
        %v1816 = vpop.f32.mrf.mxu0
        %v1817 = vadd.f32 0.0, %v1816
        %1818 = vmatmul.bf16.gmra.mxu0 %v1160
        %v1819 = vpop.f32.mrf.mxu0
        %v1820 = vadd.f32 0.0, %v1819
        %v1821 = vpop.f32.mrf.mxu0
        %v1822 = vadd.f32 0.0, %v1821
        %1823 = vmatmul.bf16.gmra.mxu0 %v1162
        %v1824 = vpop.f32.mrf.mxu0
        %v1825 = vadd.f32 0.0, %v1824
        %v1826 = vpop.f32.mrf.mxu0
        %v1827 = vadd.f32 0.0, %v1826
        %1828 = vmatmul.bf16.gmra.mxu0 %v1164
        %v1829 = vpop.f32.mrf.mxu0
        %v1830 = vadd.f32 0.0, %v1829
        %v1831 = vpop.f32.mrf.mxu0
        %v1832 = vadd.f32 0.0, %v1831
        %1833 = vmatmul.bf16.gmra.mxu0 %v1166
        %v1834 = vpop.f32.mrf.mxu0
        %v1835 = vadd.f32 0.0, %v1834
        %v1836 = vpop.f32.mrf.mxu0
        %v1837 = vadd.f32 0.0, %v1836
        %1838 = vmatmul.bf16.gmra.mxu0 %v1168
        %v1839 = vpop.f32.mrf.mxu0
        %v1840 = vadd.f32 0.0, %v1839
        %v1841 = vpop.f32.mrf.mxu0
        %v1842 = vadd.f32 0.0, %v1841
        %1843 = vmatmul.bf16.gmra.mxu0 %v1170
        %v1844 = vpop.f32.mrf.mxu0
        %v1845 = vadd.f32 0.0, %v1844
        %v1846 = vpop.f32.mrf.mxu0
        %v1847 = vadd.f32 0.0, %v1846
        %1848 = vmatmul.bf16.gmra.mxu0 %v1172
        %v1849 = vpop.f32.mrf.mxu0
        %v1850 = vadd.f32 0.0, %v1849
        %v1851 = vpop.f32.mrf.mxu0
        %v1852 = vadd.f32 0.0, %v1851
        %1853 = vmatmul.bf16.gmra.mxu0 %v1174
        %v1854 = vpop.f32.mrf.mxu0
        %v1855 = vadd.f32 0.0, %v1854
        %v1856 = vpop.f32.mrf.mxu0
        %v1857 = vadd.f32 0.0, %v1856
        %1858 = vmatmul.bf16.gmra.mxu0 %v1176
        %v1859 = vpop.f32.mrf.mxu0
        %v1860 = vadd.f32 0.0, %v1859
        %v1861 = vpop.f32.mrf.mxu0
        %v1862 = vadd.f32 0.0, %v1861
        %1863 = vmatmul.bf16.gmra.mxu0 %v1178
        %v1864 = vpop.f32.mrf.mxu0
        %v1865 = vadd.f32 0.0, %v1864
        %v1866 = vpop.f32.mrf.mxu0
        %v1867 = vadd.f32 0.0, %v1866
        %1868 = vmatmul.bf16.gmra.mxu0 %v1180
        %v1869 = vpop.f32.mrf.mxu0
        %v1870 = vadd.f32 0.0, %v1869
        %v1871 = vpop.f32.mrf.mxu0
        %v1872 = vadd.f32 0.0, %v1871
        %1873 = vmatmul.bf16.gmra.mxu0 %v1182
        %v1874 = vpop.f32.mrf.mxu0
        %v1875 = vadd.f32 0.0, %v1874
        %v1876 = vpop.f32.mrf.mxu0
        %v1877 = vadd.f32 0.0, %v1876
        %1878 = vmatmul.bf16.gmra.mxu0 %v1184
        %v1879 = vpop.f32.mrf.mxu0
        %v1880 = vadd.f32 0.0, %v1879
        %v1881 = vpop.f32.mrf.mxu0
        %v1882 = vadd.f32 0.0, %v1881
        %1883 = vmatmul.bf16.gmra.mxu0 %v1186
        %v1884 = vpop.f32.mrf.mxu0
        %v1885 = vadd.f32 0.0, %v1884
        %v1886 = vpop.f32.mrf.mxu0
        %v1887 = vadd.f32 0.0, %v1886
        %1888 = vmatmul.bf16.gmra.mxu0 %v1188
        %v1889 = vpop.f32.mrf.mxu0
        %v1890 = vadd.f32 0.0, %v1889
        %v1891 = vpop.f32.mrf.mxu0
        %v1892 = vadd.f32 0.0, %v1891
        %1893 = vmatmul.bf16.gmra.mxu0 %v1190
        %v1894 = vpop.f32.mrf.mxu0
        %v1895 = vadd.f32 0.0, %v1894
        %v1896 = vpop.f32.mrf.mxu0
        %v1897 = vadd.f32 0.0, %v1896
        %1898 = vmatmul.bf16.gmra.mxu0 %v1192
        %v1899 = vpop.f32.mrf.mxu0
        %v1900 = vadd.f32 0.0, %v1899
        %v1901 = vpop.f32.mrf.mxu0
        %v1902 = vadd.f32 0.0, %v1901
        %1903 = vmatmul.bf16.gmra.mxu0 %v1194
        %v1904 = vpop.f32.mrf.mxu0
        %v1905 = vadd.f32 0.0, %v1904
        %v1906 = vpop.f32.mrf.mxu0
        %v1907 = vadd.f32 0.0, %v1906
        %1908 = vmatmul.bf16.gmra.mxu0 %v1196
        %v1909 = vpop.f32.mrf.mxu0
        %v1910 = vadd.f32 0.0, %v1909
        %v1911 = vpop.f32.mrf.mxu0
        %v1912 = vadd.f32 0.0, %v1911
        %1913 = vmatmul.bf16.gmra.mxu0 %v1198
        %v1914 = vpop.f32.mrf.mxu0
        %v1915 = vadd.f32 0.0, %v1914
        %v1916 = vpop.f32.mrf.mxu0
        %v1917 = vadd.f32 0.0, %v1916
        %1918 = vmatmul.bf16.gmra.mxu0 %v1200
        %v1919 = vpop.f32.mrf.mxu0
        %v1920 = vadd.f32 0.0, %v1919
        %v1921 = vpop.f32.mrf.mxu0
        %v1922 = vadd.f32 0.0, %v1921
        %1923 = vmatmul.bf16.gmra.mxu0 %v1202
        %v1924 = vpop.f32.mrf.mxu0
        %v1925 = vadd.f32 0.0, %v1924
        %v1926 = vpop.f32.mrf.mxu0
        %v1927 = vadd.f32 0.0, %v1926
        %1928 = vmatmul.bf16.gmra.mxu0 %v1204
        %v1929 = vpop.f32.mrf.mxu0
        %v1930 = vadd.f32 0.0, %v1929
        %v1931 = vpop.f32.mrf.mxu0
        %v1932 = vadd.f32 0.0, %v1931
        %1933 = vmatmul.bf16.gmra.mxu0 %v1206
        %v1934 = vpop.f32.mrf.mxu0
        %v1935 = vadd.f32 0.0, %v1934
        %v1936 = vpop.f32.mrf.mxu0
        %v1937 = vadd.f32 0.0, %v1936
        %1938 = vmatmul.bf16.gmra.mxu0 %v1208
        %v1939 = vpop.f32.mrf.mxu0
        %v1940 = vadd.f32 0.0, %v1939
        %v1941 = vpop.f32.mrf.mxu0
        %v1942 = vadd.f32 0.0, %v1941
        %1943 = vmatmul.bf16.gmra.mxu0 %v1210
        %v1944 = vpop.f32.mrf.mxu0
        %v1945 = vadd.f32 0.0, %v1944
        %v1946 = vpop.f32.mrf.mxu0
        %v1947 = vadd.f32 0.0, %v1946
        %1948 = vmatmul.bf16.gmra.mxu0 %v1212
        %v1949 = vpop.f32.mrf.mxu0
        %v1950 = vadd.f32 0.0, %v1949
        %v1951 = vpop.f32.mrf.mxu0
        %v1952 = vadd.f32 0.0, %v1951
        %1953 = vmatmul.bf16.gmra.mxu0 %v1214
        %v1954 = vpop.f32.mrf.mxu0
        %v1955 = vadd.f32 0.0, %v1954
        %v1956 = vpop.f32.mrf.mxu0
        %v1957 = vadd.f32 0.0, %v1956
        %1958 = vmatmul.bf16.gmra.mxu0 %v1216
        %v1959 = vpop.f32.mrf.mxu0
        %v1960 = vadd.f32 0.0, %v1959
        %v1961 = vpop.f32.mrf.mxu0
        %v1962 = vadd.f32 0.0, %v1961
        %1963 = vmatmul.bf16.gmra.mxu0 %v1218
        %v1964 = vpop.f32.mrf.mxu0
        %v1965 = vadd.f32 0.0, %v1964
        %v1966 = vpop.f32.mrf.mxu0
        %v1967 = vadd.f32 0.0, %v1966
        %1968 = vmatmul.bf16.gmra.mxu0 %v1220
        %v1969 = vpop.f32.mrf.mxu0
        %v1970 = vadd.f32 0.0, %v1969
        %v1971 = vpop.f32.mrf.mxu0
        %v1972 = vadd.f32 0.0, %v1971
        %1973 = vmatmul.bf16.gmra.mxu0 %v1222
        %v1974 = vpop.f32.mrf.mxu0
        %v1975 = vadd.f32 0.0, %v1974
        %v1976 = vpop.f32.mrf.mxu0
        %v1977 = vadd.f32 0.0, %v1976
        %1978 = vmatmul.bf16.gmra.mxu0 %v1224
        %v1979 = vpop.f32.mrf.mxu0
        %v1980 = vadd.f32 0.0, %v1979
        %v1981 = vpop.f32.mrf.mxu0
        %v1982 = vadd.f32 0.0, %v1981
        %1983 = vmatmul.bf16.gmra.mxu0 %v1226
        %v1984 = vpop.f32.mrf.mxu0
        %v1985 = vadd.f32 0.0, %v1984
        %v1986 = vpop.f32.mrf.mxu0
        %v1987 = vadd.f32 0.0, %v1986
        %1988 = vmatmul.bf16.gmra.mxu0 %v1228
        %v1989 = vpop.f32.mrf.mxu0
        %v1990 = vadd.f32 0.0, %v1989
        %v1991 = vpop.f32.mrf.mxu0
        %v1992 = vadd.f32 0.0, %v1991
        %1993 = vmatmul.bf16.gmra.mxu0 %v1230
        %v1994 = vpop.f32.mrf.mxu0
        %v1995 = vadd.f32 0.0, %v1994
        %v1996 = vpop.f32.mrf.mxu0
        %v1997 = vadd.f32 0.0, %v1996
        %1998 = vmatmul.bf16.gmra.mxu0 %v1232
        %v1999 = vpop.f32.mrf.mxu0
        %v2000 = vadd.f32 0.0, %v1999
        %v2001 = vpop.f32.mrf.mxu0
        %v2002 = vadd.f32 0.0, %v2001
        %2003 = vmatmul.bf16.gmra.mxu0 %v1234
        %v2004 = vpop.f32.mrf.mxu0
        %v2005 = vadd.f32 0.0, %v2004
        %v2006 = vpop.f32.mrf.mxu0
        %v2007 = vadd.f32 0.0, %v2006
        %2008 = vmatmul.bf16.gmra.mxu0 %v1236
        %v2009 = vpop.f32.mrf.mxu0
        %v2010 = vadd.f32 0.0, %v2009
        %v2011 = vpop.f32.mrf.mxu0
        %v2012 = vadd.f32 0.0, %v2011
        %2013 = vmatmul.bf16.gmra.mxu0 %v1238
        %v2014 = vpop.f32.mrf.mxu0
        %v2015 = vadd.f32 0.0, %v2014
        %v2016 = vpop.f32.mrf.mxu0
        %v2017 = vadd.f32 0.0, %v2016
        %2018 = vmatmul.bf16.gmra.mxu0 %v1240
        %v2019 = vpop.f32.mrf.mxu0
        %v2020 = vadd.f32 0.0, %v2019
        %v2021 = vpop.f32.mrf.mxu0
        %v2022 = vadd.f32 0.0, %v2021
        %2023 = vmatmul.bf16.gmra.mxu0 %v1242
        %v2024 = vpop.f32.mrf.mxu0
        %v2025 = vadd.f32 0.0, %v2024
        %v2026 = vpop.f32.mrf.mxu0
        %v2027 = vadd.f32 0.0, %v2026
        %2028 = vmatmul.bf16.gmra.mxu0 %v1244
        %v2029 = vpop.f32.mrf.mxu0
        %v2030 = vadd.f32 0.0, %v2029
        %v2031 = vpop.f32.mrf.mxu0
        %v2032 = vadd.f32 0.0, %v2031
        %2033 = vmatmul.bf16.gmra.mxu0 %v1246
        %v2034 = vpop.f32.mrf.mxu0
        %v2035 = vadd.f32 0.0, %v2034
        %v2036 = vpop.f32.mrf.mxu0
        %v2037 = vadd.f32 0.0, %v2036
        %2038 = vdwg.mxu0
        %2039 = vmatpush.bf16.msra.mxu0 %v1523
        %2040 = vmatpush.bf16.msra.mxu0 %v1522
        %2041 = vmatpush.bf16.msra.mxu0 %v1521
        %2042 = vmatpush.bf16.msra.mxu0 %v1520
        %2043 = vmatpush.bf16.msra.mxu0 %v1519
        %2044 = vmatpush.bf16.msra.mxu0 %v1518
        %2045 = vmatpush.bf16.msra.mxu0 %v1517
        %2046 = vmatpush.bf16.msra.mxu0 %v1516
        %2047 = vmatmul.bf16.gmra.mxu0 %v1053
        %v2048 = vpop.f32.mrf.mxu0
        %v2049 = vadd.f32 %v1550, %v2048
        %v2050 = vpop.f32.mrf.mxu0
        %v2051 = vadd.f32 %v1552, %v2050
        %2052 = vmatmul.bf16.gmra.mxu0 %v1055
        %v2053 = vpop.f32.mrf.mxu0
        %v2054 = vadd.f32 %v1555, %v2053
        %v2055 = vpop.f32.mrf.mxu0
        %v2056 = vadd.f32 %v1557, %v2055
        %2057 = vmatmul.bf16.gmra.mxu0 %v1057
        %v2058 = vpop.f32.mrf.mxu0
        %v2059 = vadd.f32 %v1560, %v2058
        %v2060 = vpop.f32.mrf.mxu0
        %v2061 = vadd.f32 %v1562, %v2060
        %2062 = vmatmul.bf16.gmra.mxu0 %v1059
        %v2063 = vpop.f32.mrf.mxu0
        %v2064 = vadd.f32 %v1565, %v2063
        %v2065 = vpop.f32.mrf.mxu0
        %v2066 = vadd.f32 %v1567, %v2065
        %2067 = vmatmul.bf16.gmra.mxu0 %v1061
        %v2068 = vpop.f32.mrf.mxu0
        %v2069 = vadd.f32 %v1570, %v2068
        %v2070 = vpop.f32.mrf.mxu0
        %v2071 = vadd.f32 %v1572, %v2070
        %2072 = vmatmul.bf16.gmra.mxu0 %v1063
        %v2073 = vpop.f32.mrf.mxu0
        %v2074 = vadd.f32 %v1575, %v2073
        %v2075 = vpop.f32.mrf.mxu0
        %v2076 = vadd.f32 %v1577, %v2075
        %2077 = vmatmul.bf16.gmra.mxu0 %v1065
        %v2078 = vpop.f32.mrf.mxu0
        %v2079 = vadd.f32 %v1580, %v2078
        %v2080 = vpop.f32.mrf.mxu0
        %v2081 = vadd.f32 %v1582, %v2080
        %2082 = vmatmul.bf16.gmra.mxu0 %v1067
        %v2083 = vpop.f32.mrf.mxu0
        %v2084 = vadd.f32 %v1585, %v2083
        %v2085 = vpop.f32.mrf.mxu0
        %v2086 = vadd.f32 %v1587, %v2085
        %2087 = vmatmul.bf16.gmra.mxu0 %v1069
        %v2088 = vpop.f32.mrf.mxu0
        %v2089 = vadd.f32 %v1590, %v2088
        %v2090 = vpop.f32.mrf.mxu0
        %v2091 = vadd.f32 %v1592, %v2090
        %2092 = vmatmul.bf16.gmra.mxu0 %v1071
        %v2093 = vpop.f32.mrf.mxu0
        %v2094 = vadd.f32 %v1595, %v2093
        %v2095 = vpop.f32.mrf.mxu0
        %v2096 = vadd.f32 %v1597, %v2095
        %2097 = vmatmul.bf16.gmra.mxu0 %v1073
        %v2098 = vpop.f32.mrf.mxu0
        %v2099 = vadd.f32 %v1600, %v2098
        %v2100 = vpop.f32.mrf.mxu0
        %v2101 = vadd.f32 %v1602, %v2100
        %2102 = vmatmul.bf16.gmra.mxu0 %v1075
        %v2103 = vpop.f32.mrf.mxu0
        %v2104 = vadd.f32 %v1605, %v2103
        %v2105 = vpop.f32.mrf.mxu0
        %v2106 = vadd.f32 %v1607, %v2105
        %2107 = vmatmul.bf16.gmra.mxu0 %v1077
        %v2108 = vpop.f32.mrf.mxu0
        %v2109 = vadd.f32 %v1610, %v2108
        %v2110 = vpop.f32.mrf.mxu0
        %v2111 = vadd.f32 %v1612, %v2110
        %2112 = vmatmul.bf16.gmra.mxu0 %v1079
        %v2113 = vpop.f32.mrf.mxu0
        %v2114 = vadd.f32 %v1615, %v2113
        %v2115 = vpop.f32.mrf.mxu0
        %v2116 = vadd.f32 %v1617, %v2115
        %2117 = vmatmul.bf16.gmra.mxu0 %v1081
        %v2118 = vpop.f32.mrf.mxu0
        %v2119 = vadd.f32 %v1620, %v2118
        %v2120 = vpop.f32.mrf.mxu0
        %v2121 = vadd.f32 %v1622, %v2120
        %2122 = vmatmul.bf16.gmra.mxu0 %v1083
        %v2123 = vpop.f32.mrf.mxu0
        %v2124 = vadd.f32 %v1625, %v2123
        %v2125 = vpop.f32.mrf.mxu0
        %v2126 = vadd.f32 %v1627, %v2125
        %2127 = vmatmul.bf16.gmra.mxu0 %v1085
        %v2128 = vpop.f32.mrf.mxu0
        %v2129 = vadd.f32 %v1630, %v2128
        %v2130 = vpop.f32.mrf.mxu0
        %v2131 = vadd.f32 %v1632, %v2130
        %2132 = vmatmul.bf16.gmra.mxu0 %v1087
        %v2133 = vpop.f32.mrf.mxu0
        %v2134 = vadd.f32 %v1635, %v2133
        %v2135 = vpop.f32.mrf.mxu0
        %v2136 = vadd.f32 %v1637, %v2135
        %2137 = vmatmul.bf16.gmra.mxu0 %v1089
        %v2138 = vpop.f32.mrf.mxu0
        %v2139 = vadd.f32 %v1640, %v2138
        %v2140 = vpop.f32.mrf.mxu0
        %v2141 = vadd.f32 %v1642, %v2140
        %2142 = vmatmul.bf16.gmra.mxu0 %v1091
        %v2143 = vpop.f32.mrf.mxu0
        %v2144 = vadd.f32 %v1645, %v2143
        %v2145 = vpop.f32.mrf.mxu0
        %v2146 = vadd.f32 %v1647, %v2145
        %2147 = vmatmul.bf16.gmra.mxu0 %v1093
        %v2148 = vpop.f32.mrf.mxu0
        %v2149 = vadd.f32 %v1650, %v2148
        %v2150 = vpop.f32.mrf.mxu0
        %v2151 = vadd.f32 %v1652, %v2150
        %2152 = vmatmul.bf16.gmra.mxu0 %v1095
        %v2153 = vpop.f32.mrf.mxu0
        %v2154 = vadd.f32 %v1655, %v2153
        %v2155 = vpop.f32.mrf.mxu0
        %v2156 = vadd.f32 %v1657, %v2155
        %2157 = vmatmul.bf16.gmra.mxu0 %v1097
        %v2158 = vpop.f32.mrf.mxu0
        %v2159 = vadd.f32 %v1660, %v2158
        %v2160 = vpop.f32.mrf.mxu0
        %v2161 = vadd.f32 %v1662, %v2160
        %2162 = vmatmul.bf16.gmra.mxu0 %v1099
        %v2163 = vpop.f32.mrf.mxu0
        %v2164 = vadd.f32 %v1665, %v2163
        %v2165 = vpop.f32.mrf.mxu0
        %v2166 = vadd.f32 %v1667, %v2165
        %2167 = vmatmul.bf16.gmra.mxu0 %v1101
        %v2168 = vpop.f32.mrf.mxu0
        %v2169 = vadd.f32 %v1670, %v2168
        %v2170 = vpop.f32.mrf.mxu0
        %v2171 = vadd.f32 %v1672, %v2170
        %2172 = vmatmul.bf16.gmra.mxu0 %v1103
        %v2173 = vpop.f32.mrf.mxu0
        %v2174 = vadd.f32 %v1675, %v2173
        %v2175 = vpop.f32.mrf.mxu0
        %v2176 = vadd.f32 %v1677, %v2175
        %2177 = vmatmul.bf16.gmra.mxu0 %v1105
        %v2178 = vpop.f32.mrf.mxu0
        %v2179 = vadd.f32 %v1680, %v2178
        %v2180 = vpop.f32.mrf.mxu0
        %v2181 = vadd.f32 %v1682, %v2180
        %2182 = vmatmul.bf16.gmra.mxu0 %v1107
        %v2183 = vpop.f32.mrf.mxu0
        %v2184 = vadd.f32 %v1685, %v2183
        %v2185 = vpop.f32.mrf.mxu0
        %v2186 = vadd.f32 %v1687, %v2185
        %2187 = vmatmul.bf16.gmra.mxu0 %v1109
        %v2188 = vpop.f32.mrf.mxu0
        %v2189 = vadd.f32 %v1690, %v2188
        %v2190 = vpop.f32.mrf.mxu0
        %v2191 = vadd.f32 %v1692, %v2190
        %2192 = vmatmul.bf16.gmra.mxu0 %v1111
        %v2193 = vpop.f32.mrf.mxu0
        %v2194 = vadd.f32 %v1695, %v2193
        %v2195 = vpop.f32.mrf.mxu0
        %v2196 = vadd.f32 %v1697, %v2195
        %2197 = vmatmul.bf16.gmra.mxu0 %v1113
        %v2198 = vpop.f32.mrf.mxu0
        %v2199 = vadd.f32 %v1700, %v2198
        %v2200 = vpop.f32.mrf.mxu0
        %v2201 = vadd.f32 %v1702, %v2200
        %2202 = vmatmul.bf16.gmra.mxu0 %v1115
        %v2203 = vpop.f32.mrf.mxu0
        %v2204 = vadd.f32 %v1705, %v2203
        %v2205 = vpop.f32.mrf.mxu0
        %v2206 = vadd.f32 %v1707, %v2205
        %2207 = vmatmul.bf16.gmra.mxu0 %v1117
        %v2208 = vpop.f32.mrf.mxu0
        %v2209 = vadd.f32 %v1710, %v2208
        %v2210 = vpop.f32.mrf.mxu0
        %v2211 = vadd.f32 %v1712, %v2210
        %2212 = vmatmul.bf16.gmra.mxu0 %v1119
        %v2213 = vpop.f32.mrf.mxu0
        %v2214 = vadd.f32 %v1715, %v2213
        %v2215 = vpop.f32.mrf.mxu0
        %v2216 = vadd.f32 %v1717, %v2215
        %2217 = vmatmul.bf16.gmra.mxu0 %v1121
        %v2218 = vpop.f32.mrf.mxu0
        %v2219 = vadd.f32 %v1720, %v2218
        %v2220 = vpop.f32.mrf.mxu0
        %v2221 = vadd.f32 %v1722, %v2220
        %2222 = vmatmul.bf16.gmra.mxu0 %v1123
        %v2223 = vpop.f32.mrf.mxu0
        %v2224 = vadd.f32 %v1725, %v2223
        %v2225 = vpop.f32.mrf.mxu0
        %v2226 = vadd.f32 %v1727, %v2225
        %2227 = vmatmul.bf16.gmra.mxu0 %v1125
        %v2228 = vpop.f32.mrf.mxu0
        %v2229 = vadd.f32 %v1730, %v2228
        %v2230 = vpop.f32.mrf.mxu0
        %v2231 = vadd.f32 %v1732, %v2230
        %2232 = vmatmul.bf16.gmra.mxu0 %v1127
        %v2233 = vpop.f32.mrf.mxu0
        %v2234 = vadd.f32 %v1735, %v2233
        %v2235 = vpop.f32.mrf.mxu0
        %v2236 = vadd.f32 %v1737, %v2235
        %2237 = vmatmul.bf16.gmra.mxu0 %v1129
        %v2238 = vpop.f32.mrf.mxu0
        %v2239 = vadd.f32 %v1740, %v2238
        %v2240 = vpop.f32.mrf.mxu0
        %v2241 = vadd.f32 %v1742, %v2240
        %2242 = vmatmul.bf16.gmra.mxu0 %v1131
        %v2243 = vpop.f32.mrf.mxu0
        %v2244 = vadd.f32 %v1745, %v2243
        %v2245 = vpop.f32.mrf.mxu0
        %v2246 = vadd.f32 %v1747, %v2245
        %2247 = vmatmul.bf16.gmra.mxu0 %v1133
        %v2248 = vpop.f32.mrf.mxu0
        %v2249 = vadd.f32 %v1750, %v2248
        %v2250 = vpop.f32.mrf.mxu0
        %v2251 = vadd.f32 %v1752, %v2250
        %2252 = vmatmul.bf16.gmra.mxu0 %v1135
        %v2253 = vpop.f32.mrf.mxu0
        %v2254 = vadd.f32 %v1755, %v2253
        %v2255 = vpop.f32.mrf.mxu0
        %v2256 = vadd.f32 %v1757, %v2255
        %2257 = vmatmul.bf16.gmra.mxu0 %v1137
        %v2258 = vpop.f32.mrf.mxu0
        %v2259 = vadd.f32 %v1760, %v2258
        %v2260 = vpop.f32.mrf.mxu0
        %v2261 = vadd.f32 %v1762, %v2260
        %2262 = vmatmul.bf16.gmra.mxu0 %v1139
        %v2263 = vpop.f32.mrf.mxu0
        %v2264 = vadd.f32 %v1765, %v2263
        %v2265 = vpop.f32.mrf.mxu0
        %v2266 = vadd.f32 %v1767, %v2265
        %2267 = vmatmul.bf16.gmra.mxu0 %v1141
        %v2268 = vpop.f32.mrf.mxu0
        %v2269 = vadd.f32 %v1770, %v2268
        %v2270 = vpop.f32.mrf.mxu0
        %v2271 = vadd.f32 %v1772, %v2270
        %2272 = vmatmul.bf16.gmra.mxu0 %v1143
        %v2273 = vpop.f32.mrf.mxu0
        %v2274 = vadd.f32 %v1775, %v2273
        %v2275 = vpop.f32.mrf.mxu0
        %v2276 = vadd.f32 %v1777, %v2275
        %2277 = vmatmul.bf16.gmra.mxu0 %v1145
        %v2278 = vpop.f32.mrf.mxu0
        %v2279 = vadd.f32 %v1780, %v2278
        %v2280 = vpop.f32.mrf.mxu0
        %v2281 = vadd.f32 %v1782, %v2280
        %2282 = vmatmul.bf16.gmra.mxu0 %v1147
        %v2283 = vpop.f32.mrf.mxu0
        %v2284 = vadd.f32 %v1785, %v2283
        %v2285 = vpop.f32.mrf.mxu0
        %v2286 = vadd.f32 %v1787, %v2285
        %2287 = vmatmul.bf16.gmra.mxu0 %v1149
        %v2288 = vpop.f32.mrf.mxu0
        %v2289 = vadd.f32 %v1790, %v2288
        %v2290 = vpop.f32.mrf.mxu0
        %v2291 = vadd.f32 %v1792, %v2290
        %2292 = vmatmul.bf16.gmra.mxu0 %v1151
        %v2293 = vpop.f32.mrf.mxu0
        %v2294 = vadd.f32 %v1795, %v2293
        %v2295 = vpop.f32.mrf.mxu0
        %v2296 = vadd.f32 %v1797, %v2295
        %2297 = vmatmul.bf16.gmra.mxu0 %v1153
        %v2298 = vpop.f32.mrf.mxu0
        %v2299 = vadd.f32 %v1800, %v2298
        %v2300 = vpop.f32.mrf.mxu0
        %v2301 = vadd.f32 %v1802, %v2300
        %2302 = vmatmul.bf16.gmra.mxu0 %v1155
        %v2303 = vpop.f32.mrf.mxu0
        %v2304 = vadd.f32 %v1805, %v2303
        %v2305 = vpop.f32.mrf.mxu0
        %v2306 = vadd.f32 %v1807, %v2305
        %2307 = vmatmul.bf16.gmra.mxu0 %v1157
        %v2308 = vpop.f32.mrf.mxu0
        %v2309 = vadd.f32 %v1810, %v2308
        %v2310 = vpop.f32.mrf.mxu0
        %v2311 = vadd.f32 %v1812, %v2310
        %2312 = vmatmul.bf16.gmra.mxu0 %v1159
        %v2313 = vpop.f32.mrf.mxu0
        %v2314 = vadd.f32 %v1815, %v2313
        %v2315 = vpop.f32.mrf.mxu0
        %v2316 = vadd.f32 %v1817, %v2315
        %2317 = vmatmul.bf16.gmra.mxu0 %v1161
        %v2318 = vpop.f32.mrf.mxu0
        %v2319 = vadd.f32 %v1820, %v2318
        %v2320 = vpop.f32.mrf.mxu0
        %v2321 = vadd.f32 %v1822, %v2320
        %2322 = vmatmul.bf16.gmra.mxu0 %v1163
        %v2323 = vpop.f32.mrf.mxu0
        %v2324 = vadd.f32 %v1825, %v2323
        %v2325 = vpop.f32.mrf.mxu0
        %v2326 = vadd.f32 %v1827, %v2325
        %2327 = vmatmul.bf16.gmra.mxu0 %v1165
        %v2328 = vpop.f32.mrf.mxu0
        %v2329 = vadd.f32 %v1830, %v2328
        %v2330 = vpop.f32.mrf.mxu0
        %v2331 = vadd.f32 %v1832, %v2330
        %2332 = vmatmul.bf16.gmra.mxu0 %v1167
        %v2333 = vpop.f32.mrf.mxu0
        %v2334 = vadd.f32 %v1835, %v2333
        %v2335 = vpop.f32.mrf.mxu0
        %v2336 = vadd.f32 %v1837, %v2335
        %2337 = vmatmul.bf16.gmra.mxu0 %v1169
        %v2338 = vpop.f32.mrf.mxu0
        %v2339 = vadd.f32 %v1840, %v2338
        %v2340 = vpop.f32.mrf.mxu0
        %v2341 = vadd.f32 %v1842, %v2340
        %2342 = vmatmul.bf16.gmra.mxu0 %v1171
        %v2343 = vpop.f32.mrf.mxu0
        %v2344 = vadd.f32 %v1845, %v2343
        %v2345 = vpop.f32.mrf.mxu0
        %v2346 = vadd.f32 %v1847, %v2345
        %2347 = vmatmul.bf16.gmra.mxu0 %v1173
        %v2348 = vpop.f32.mrf.mxu0
        %v2349 = vadd.f32 %v1850, %v2348
        %v2350 = vpop.f32.mrf.mxu0
        %v2351 = vadd.f32 %v1852, %v2350
        %2352 = vmatmul.bf16.gmra.mxu0 %v1175
        %v2353 = vpop.f32.mrf.mxu0
        %v2354 = vadd.f32 %v1855, %v2353
        %v2355 = vpop.f32.mrf.mxu0
        %v2356 = vadd.f32 %v1857, %v2355
        %2357 = vmatmul.bf16.gmra.mxu0 %v1177
        %v2358 = vpop.f32.mrf.mxu0
        %v2359 = vadd.f32 %v1860, %v2358
        %v2360 = vpop.f32.mrf.mxu0
        %v2361 = vadd.f32 %v1862, %v2360
        %2362 = vmatmul.bf16.gmra.mxu0 %v1179
        %v2363 = vpop.f32.mrf.mxu0
        %v2364 = vadd.f32 %v1865, %v2363
        %v2365 = vpop.f32.mrf.mxu0
        %v2366 = vadd.f32 %v1867, %v2365
        %2367 = vmatmul.bf16.gmra.mxu0 %v1181
        %v2368 = vpop.f32.mrf.mxu0
        %v2369 = vadd.f32 %v1870, %v2368
        %v2370 = vpop.f32.mrf.mxu0
        %v2371 = vadd.f32 %v1872, %v2370
        %2372 = vmatmul.bf16.gmra.mxu0 %v1183
        %v2373 = vpop.f32.mrf.mxu0
        %v2374 = vadd.f32 %v1875, %v2373
        %v2375 = vpop.f32.mrf.mxu0
        %v2376 = vadd.f32 %v1877, %v2375
        %2377 = vmatmul.bf16.gmra.mxu0 %v1185
        %v2378 = vpop.f32.mrf.mxu0
        %v2379 = vadd.f32 %v1880, %v2378
        %v2380 = vpop.f32.mrf.mxu0
        %v2381 = vadd.f32 %v1882, %v2380
        %2382 = vmatmul.bf16.gmra.mxu0 %v1187
        %v2383 = vpop.f32.mrf.mxu0
        %v2384 = vadd.f32 %v1885, %v2383
        %v2385 = vpop.f32.mrf.mxu0
        %v2386 = vadd.f32 %v1887, %v2385
        %2387 = vmatmul.bf16.gmra.mxu0 %v1189
        %v2388 = vpop.f32.mrf.mxu0
        %v2389 = vadd.f32 %v1890, %v2388
        %v2390 = vpop.f32.mrf.mxu0
        %v2391 = vadd.f32 %v1892, %v2390
        %2392 = vmatmul.bf16.gmra.mxu0 %v1191
        %v2393 = vpop.f32.mrf.mxu0
        %v2394 = vadd.f32 %v1895, %v2393
        %v2395 = vpop.f32.mrf.mxu0
        %v2396 = vadd.f32 %v1897, %v2395
        %2397 = vmatmul.bf16.gmra.mxu0 %v1193
        %v2398 = vpop.f32.mrf.mxu0
        %v2399 = vadd.f32 %v1900, %v2398
        %v2400 = vpop.f32.mrf.mxu0
        %v2401 = vadd.f32 %v1902, %v2400
        %2402 = vmatmul.bf16.gmra.mxu0 %v1195
        %v2403 = vpop.f32.mrf.mxu0
        %v2404 = vadd.f32 %v1905, %v2403
        %v2405 = vpop.f32.mrf.mxu0
        %v2406 = vadd.f32 %v1907, %v2405
        %2407 = vmatmul.bf16.gmra.mxu0 %v1197
        %v2408 = vpop.f32.mrf.mxu0
        %v2409 = vadd.f32 %v1910, %v2408
        %v2410 = vpop.f32.mrf.mxu0
        %v2411 = vadd.f32 %v1912, %v2410
        %2412 = vmatmul.bf16.gmra.mxu0 %v1199
        %v2413 = vpop.f32.mrf.mxu0
        %v2414 = vadd.f32 %v1915, %v2413
        %v2415 = vpop.f32.mrf.mxu0
        %v2416 = vadd.f32 %v1917, %v2415
        %2417 = vmatmul.bf16.gmra.mxu0 %v1201
        %v2418 = vpop.f32.mrf.mxu0
        %v2419 = vadd.f32 %v1920, %v2418
        %v2420 = vpop.f32.mrf.mxu0
        %v2421 = vadd.f32 %v1922, %v2420
        %2422 = vmatmul.bf16.gmra.mxu0 %v1203
        %v2423 = vpop.f32.mrf.mxu0
        %v2424 = vadd.f32 %v1925, %v2423
        %v2425 = vpop.f32.mrf.mxu0
        %v2426 = vadd.f32 %v1927, %v2425
        %2427 = vmatmul.bf16.gmra.mxu0 %v1205
        %v2428 = vpop.f32.mrf.mxu0
        %v2429 = vadd.f32 %v1930, %v2428
        %v2430 = vpop.f32.mrf.mxu0
        %v2431 = vadd.f32 %v1932, %v2430
        %2432 = vmatmul.bf16.gmra.mxu0 %v1207
        %v2433 = vpop.f32.mrf.mxu0
        %v2434 = vadd.f32 %v1935, %v2433
        %v2435 = vpop.f32.mrf.mxu0
        %v2436 = vadd.f32 %v1937, %v2435
        %2437 = vmatmul.bf16.gmra.mxu0 %v1209
        %v2438 = vpop.f32.mrf.mxu0
        %v2439 = vadd.f32 %v1940, %v2438
        %v2440 = vpop.f32.mrf.mxu0
        %v2441 = vadd.f32 %v1942, %v2440
        %2442 = vmatmul.bf16.gmra.mxu0 %v1211
        %v2443 = vpop.f32.mrf.mxu0
        %v2444 = vadd.f32 %v1945, %v2443
        %v2445 = vpop.f32.mrf.mxu0
        %v2446 = vadd.f32 %v1947, %v2445
        %2447 = vmatmul.bf16.gmra.mxu0 %v1213
        %v2448 = vpop.f32.mrf.mxu0
        %v2449 = vadd.f32 %v1950, %v2448
        %v2450 = vpop.f32.mrf.mxu0
        %v2451 = vadd.f32 %v1952, %v2450
        %2452 = vmatmul.bf16.gmra.mxu0 %v1215
        %v2453 = vpop.f32.mrf.mxu0
        %v2454 = vadd.f32 %v1955, %v2453
        %v2455 = vpop.f32.mrf.mxu0
        %v2456 = vadd.f32 %v1957, %v2455
        %2457 = vmatmul.bf16.gmra.mxu0 %v1217
        %v2458 = vpop.f32.mrf.mxu0
        %v2459 = vadd.f32 %v1960, %v2458
        %v2460 = vpop.f32.mrf.mxu0
        %v2461 = vadd.f32 %v1962, %v2460
        %2462 = vmatmul.bf16.gmra.mxu0 %v1219
        %v2463 = vpop.f32.mrf.mxu0
        %v2464 = vadd.f32 %v1965, %v2463
        %v2465 = vpop.f32.mrf.mxu0
        %v2466 = vadd.f32 %v1967, %v2465
        %2467 = vmatmul.bf16.gmra.mxu0 %v1221
        %v2468 = vpop.f32.mrf.mxu0
        %v2469 = vadd.f32 %v1970, %v2468
        %v2470 = vpop.f32.mrf.mxu0
        %v2471 = vadd.f32 %v1972, %v2470
        %2472 = vmatmul.bf16.gmra.mxu0 %v1223
        %v2473 = vpop.f32.mrf.mxu0
        %v2474 = vadd.f32 %v1975, %v2473
        %v2475 = vpop.f32.mrf.mxu0
        %v2476 = vadd.f32 %v1977, %v2475
        %2477 = vmatmul.bf16.gmra.mxu0 %v1225
        %v2478 = vpop.f32.mrf.mxu0
        %v2479 = vadd.f32 %v1980, %v2478
        %v2480 = vpop.f32.mrf.mxu0
        %v2481 = vadd.f32 %v1982, %v2480
        %2482 = vmatmul.bf16.gmra.mxu0 %v1227
        %v2483 = vpop.f32.mrf.mxu0
        %v2484 = vadd.f32 %v1985, %v2483
        %v2485 = vpop.f32.mrf.mxu0
        %v2486 = vadd.f32 %v1987, %v2485
        %2487 = vmatmul.bf16.gmra.mxu0 %v1229
        %v2488 = vpop.f32.mrf.mxu0
        %v2489 = vadd.f32 %v1990, %v2488
        %v2490 = vpop.f32.mrf.mxu0
        %v2491 = vadd.f32 %v1992, %v2490
        %2492 = vmatmul.bf16.gmra.mxu0 %v1231
        %v2493 = vpop.f32.mrf.mxu0
        %v2494 = vadd.f32 %v1995, %v2493
        %v2495 = vpop.f32.mrf.mxu0
        %v2496 = vadd.f32 %v1997, %v2495
        %2497 = vmatmul.bf16.gmra.mxu0 %v1233
        %v2498 = vpop.f32.mrf.mxu0
        %v2499 = vadd.f32 %v2000, %v2498
        %v2500 = vpop.f32.mrf.mxu0
        %v2501 = vadd.f32 %v2002, %v2500
        %2502 = vmatmul.bf16.gmra.mxu0 %v1235
        %v2503 = vpop.f32.mrf.mxu0
        %v2504 = vadd.f32 %v2005, %v2503
        %v2505 = vpop.f32.mrf.mxu0
        %v2506 = vadd.f32 %v2007, %v2505
        %2507 = vmatmul.bf16.gmra.mxu0 %v1237
        %v2508 = vpop.f32.mrf.mxu0
        %v2509 = vadd.f32 %v2010, %v2508
        %v2510 = vpop.f32.mrf.mxu0
        %v2511 = vadd.f32 %v2012, %v2510
        %2512 = vmatmul.bf16.gmra.mxu0 %v1239
        %v2513 = vpop.f32.mrf.mxu0
        %v2514 = vadd.f32 %v2015, %v2513
        %v2515 = vpop.f32.mrf.mxu0
        %v2516 = vadd.f32 %v2017, %v2515
        %2517 = vmatmul.bf16.gmra.mxu0 %v1241
        %v2518 = vpop.f32.mrf.mxu0
        %v2519 = vadd.f32 %v2020, %v2518
        %v2520 = vpop.f32.mrf.mxu0
        %v2521 = vadd.f32 %v2022, %v2520
        %2522 = vmatmul.bf16.gmra.mxu0 %v1243
        %v2523 = vpop.f32.mrf.mxu0
        %v2524 = vadd.f32 %v2025, %v2523
        %v2525 = vpop.f32.mrf.mxu0
        %v2526 = vadd.f32 %v2027, %v2525
        %2527 = vmatmul.bf16.gmra.mxu0 %v1245
        %v2528 = vpop.f32.mrf.mxu0
        %v2529 = vadd.f32 %v2030, %v2528
        %v2530 = vpop.f32.mrf.mxu0
        %v2531 = vadd.f32 %v2032, %v2530
        %2532 = vmatmul.bf16.gmra.mxu0 %v1247
        %v2533 = vpop.f32.mrf.mxu0
        %v2534 = vadd.f32 %v2035, %v2533
        %v2535 = vpop.f32.mrf.mxu0
        %v2536 = vadd.f32 %v2037, %v2535
        %2537 = vdwg.mxu0
        %vm2538 = vcmask 31744
        %2539 = vst.msk [vmem:[%s235] sm:$0xff] %vm2538, %v2049
        %2540 = vst.msk [vmem:[%s235 + $0x8] sm:$0xff] %vm2538, %v2051
        %2541 = vst.msk [vmem:[%s235 + $0x10] sm:$0xff] %vm2538, %v2054
        %2542 = vst.msk [vmem:[%s235 + $0x18] sm:$0xff] %vm2538, %v2056
        %2543 = vst.msk [vmem:[%s235 + $0x20] sm:$0xff] %vm2538, %v2059
        %2544 = vst.msk [vmem:[%s235 + $0x28] sm:$0xff] %vm2538, %v2061
        %2545 = vst.msk [vmem:[%s235 + $0x30] sm:$0xff] %vm2538, %v2064
        %2546 = vst.msk [vmem:[%s235 + $0x38] sm:$0xff] %vm2538, %v2066
        %2547 = vst.msk [vmem:[%s235 + $0x40] sm:$0xff] %vm2538, %v2069
        %2548 = vst.msk [vmem:[%s235 + $0x48] sm:$0xff] %vm2538, %v2071
        %2549 = vst.msk [vmem:[%s235 + $0x50] sm:$0xff] %vm2538, %v2074
        %2550 = vst.msk [vmem:[%s235 + $0x58] sm:$0xff] %vm2538, %v2076
        %2551 = vst.msk [vmem:[%s235 + $0x60] sm:$0xff] %vm2538, %v2079
        %2552 = vst.msk [vmem:[%s235 + $0x68] sm:$0xff] %vm2538, %v2081
        %2553 = vst.msk [vmem:[%s235 + $0x70] sm:$0xff] %vm2538, %v2084
        %2554 = vst.msk [vmem:[%s235 + $0x78] sm:$0xff] %vm2538, %v2086
        %2555 = vst.msk [vmem:[%s235 + $0x80] sm:$0xff] %vm2538, %v2089
        %2556 = vst.msk [vmem:[%s235 + $0x88] sm:$0xff] %vm2538, %v2091
        %2557 = vst.msk [vmem:[%s235 + $0x90] sm:$0xff] %vm2538, %v2094
        %2558 = vst.msk [vmem:[%s235 + $0x98] sm:$0xff] %vm2538, %v2096
        %2559 = vst.msk [vmem:[%s235 + $0xa0] sm:$0xff] %vm2538, %v2099
        %2560 = vst.msk [vmem:[%s235 + $0xa8] sm:$0xff] %vm2538, %v2101
        %2561 = vst.msk [vmem:[%s235 + $0xb0] sm:$0xff] %vm2538, %v2104
        %2562 = vst.msk [vmem:[%s235 + $0xb8] sm:$0xff] %vm2538, %v2106
        %2563 = vst.msk [vmem:[%s235 + $0xc0] sm:$0xff] %vm2538, %v2109
        %2564 = vst.msk [vmem:[%s235 + $0xc8] sm:$0xff] %vm2538, %v2111
        %2565 = vst.msk [vmem:[%s235 + $0xd0] sm:$0xff] %vm2538, %v2114
        %2566 = vst.msk [vmem:[%s235 + $0xd8] sm:$0xff] %vm2538, %v2116
        %2567 = vst.msk [vmem:[%s235 + $0xe0] sm:$0xff] %vm2538, %v2119
        %2568 = vst.msk [vmem:[%s235 + $0xe8] sm:$0xff] %vm2538, %v2121
        %2569 = vst.msk [vmem:[%s235 + $0xf0] sm:$0xff] %vm2538, %v2124
        %2570 = vst.msk [vmem:[%s235 + $0xf8] sm:$0xff] %vm2538, %v2126
        %2571 = vst.msk [vmem:[%s235 + $0x100] sm:$0xff] %vm2538, %v2129
        %2572 = vst.msk [vmem:[%s235 + $0x108] sm:$0xff] %vm2538, %v2131
        %2573 = vst.msk [vmem:[%s235 + $0x110] sm:$0xff] %vm2538, %v2134
        %2574 = vst.msk [vmem:[%s235 + $0x118] sm:$0xff] %vm2538, %v2136
        %2575 = vst.msk [vmem:[%s235 + $0x120] sm:$0xff] %vm2538, %v2139
        %2576 = vst.msk [vmem:[%s235 + $0x128] sm:$0xff] %vm2538, %v2141
        %2577 = vst.msk [vmem:[%s235 + $0x130] sm:$0xff] %vm2538, %v2144
        %2578 = vst.msk [vmem:[%s235 + $0x138] sm:$0xff] %vm2538, %v2146
        %2579 = vst.msk [vmem:[%s235 + $0x140] sm:$0xff] %vm2538, %v2149
        %2580 = vst.msk [vmem:[%s235 + $0x148] sm:$0xff] %vm2538, %v2151
        %2581 = vst.msk [vmem:[%s235 + $0x150] sm:$0xff] %vm2538, %v2154
        %2582 = vst.msk [vmem:[%s235 + $0x158] sm:$0xff] %vm2538, %v2156
        %2583 = vst.msk [vmem:[%s235 + $0x160] sm:$0xff] %vm2538, %v2159
        %2584 = vst.msk [vmem:[%s235 + $0x168] sm:$0xff] %vm2538, %v2161
        %2585 = vst.msk [vmem:[%s235 + $0x170] sm:$0xff] %vm2538, %v2164
        %2586 = vst.msk [vmem:[%s235 + $0x178] sm:$0xff] %vm2538, %v2166
        %2587 = vst.msk [vmem:[%s235 + $0x180] sm:$0xff] %vm2538, %v2169
        %2588 = vst.msk [vmem:[%s235 + $0x188] sm:$0xff] %vm2538, %v2171
        %2589 = vst.msk [vmem:[%s235 + $0x190] sm:$0xff] %vm2538, %v2174
        %2590 = vst.msk [vmem:[%s235 + $0x198] sm:$0xff] %vm2538, %v2176
        %2591 = vst.msk [vmem:[%s235 + $0x1a0] sm:$0xff] %vm2538, %v2179
        %2592 = vst.msk [vmem:[%s235 + $0x1a8] sm:$0xff] %vm2538, %v2181
        %2593 = vst.msk [vmem:[%s235 + $0x1b0] sm:$0xff] %vm2538, %v2184
        %2594 = vst.msk [vmem:[%s235 + $0x1b8] sm:$0xff] %vm2538, %v2186
        %2595 = vst.msk [vmem:[%s235 + $0x1c0] sm:$0xff] %vm2538, %v2189
        %2596 = vst.msk [vmem:[%s235 + $0x1c8] sm:$0xff] %vm2538, %v2191
        %2597 = vst.msk [vmem:[%s235 + $0x1d0] sm:$0xff] %vm2538, %v2194
        %2598 = vst.msk [vmem:[%s235 + $0x1d8] sm:$0xff] %vm2538, %v2196
        %2599 = vst.msk [vmem:[%s235 + $0x1e0] sm:$0xff] %vm2538, %v2199
        %2600 = vst.msk [vmem:[%s235 + $0x1e8] sm:$0xff] %vm2538, %v2201
        %2601 = vst.msk [vmem:[%s235 + $0x1f0] sm:$0xff] %vm2538, %v2204
        %2602 = vst.msk [vmem:[%s235 + $0x1f8] sm:$0xff] %vm2538, %v2206
        %2603 = vst.msk [vmem:[%s235 + $0x200] sm:$0xff] %vm2538, %v2209
        %2604 = vst.msk [vmem:[%s235 + $0x208] sm:$0xff] %vm2538, %v2211
        %2605 = vst.msk [vmem:[%s235 + $0x210] sm:$0xff] %vm2538, %v2214
        %2606 = vst.msk [vmem:[%s235 + $0x218] sm:$0xff] %vm2538, %v2216
        %2607 = vst.msk [vmem:[%s235 + $0x220] sm:$0xff] %vm2538, %v2219
        %2608 = vst.msk [vmem:[%s235 + $0x228] sm:$0xff] %vm2538, %v2221
        %2609 = vst.msk [vmem:[%s235 + $0x230] sm:$0xff] %vm2538, %v2224
        %2610 = vst.msk [vmem:[%s235 + $0x238] sm:$0xff] %vm2538, %v2226
        %2611 = vst.msk [vmem:[%s235 + $0x240] sm:$0xff] %vm2538, %v2229
        %2612 = vst.msk [vmem:[%s235 + $0x248] sm:$0xff] %vm2538, %v2231
        %2613 = vst.msk [vmem:[%s235 + $0x250] sm:$0xff] %vm2538, %v2234
        %2614 = vst.msk [vmem:[%s235 + $0x258] sm:$0xff] %vm2538, %v2236
        %2615 = vst.msk [vmem:[%s235 + $0x260] sm:$0xff] %vm2538, %v2239
        %2616 = vst.msk [vmem:[%s235 + $0x268] sm:$0xff] %vm2538, %v2241
        %2617 = vst.msk [vmem:[%s235 + $0x270] sm:$0xff] %vm2538, %v2244
        %2618 = vst.msk [vmem:[%s235 + $0x278] sm:$0xff] %vm2538, %v2246
        %2619 = vst.msk [vmem:[%s235 + $0x280] sm:$0xff] %vm2538, %v2249
        %2620 = vst.msk [vmem:[%s235 + $0x288] sm:$0xff] %vm2538, %v2251
        %2621 = vst.msk [vmem:[%s235 + $0x290] sm:$0xff] %vm2538, %v2254
        %2622 = vst.msk [vmem:[%s235 + $0x298] sm:$0xff] %vm2538, %v2256
        %2623 = vst.msk [vmem:[%s235 + $0x2a0] sm:$0xff] %vm2538, %v2259
        %2624 = vst.msk [vmem:[%s235 + $0x2a8] sm:$0xff] %vm2538, %v2261
        %2625 = vst.msk [vmem:[%s235 + $0x2b0] sm:$0xff] %vm2538, %v2264
        %2626 = vst.msk [vmem:[%s235 + $0x2b8] sm:$0xff] %vm2538, %v2266
        %2627 = vst.msk [vmem:[%s235 + $0x2c0] sm:$0xff] %vm2538, %v2269
        %2628 = vst.msk [vmem:[%s235 + $0x2c8] sm:$0xff] %vm2538, %v2271
        %2629 = vst.msk [vmem:[%s235 + $0x2d0] sm:$0xff] %vm2538, %v2274
        %2630 = vst.msk [vmem:[%s235 + $0x2d8] sm:$0xff] %vm2538, %v2276
        %2631 = vst.msk [vmem:[%s235 + $0x2e0] sm:$0xff] %vm2538, %v2279
        %2632 = vst.msk [vmem:[%s235 + $0x2e8] sm:$0xff] %vm2538, %v2281
        %2633 = vst.msk [vmem:[%s235 + $0x2f0] sm:$0xff] %vm2538, %v2284
        %2634 = vst.msk [vmem:[%s235 + $0x2f8] sm:$0xff] %vm2538, %v2286
        %2635 = vst.msk [vmem:[%s235 + $0x300] sm:$0xff] %vm2538, %v2289
        %2636 = vst.msk [vmem:[%s235 + $0x308] sm:$0xff] %vm2538, %v2291
        %2637 = vst.msk [vmem:[%s235 + $0x310] sm:$0xff] %vm2538, %v2294
        %2638 = vst.msk [vmem:[%s235 + $0x318] sm:$0xff] %vm2538, %v2296
        %2639 = vst.msk [vmem:[%s235 + $0x320] sm:$0xff] %vm2538, %v2299
        %2640 = vst.msk [vmem:[%s235 + $0x328] sm:$0xff] %vm2538, %v2301
        %2641 = vst.msk [vmem:[%s235 + $0x330] sm:$0xff] %vm2538, %v2304
        %2642 = vst.msk [vmem:[%s235 + $0x338] sm:$0xff] %vm2538, %v2306
        %2643 = vst.msk [vmem:[%s235 + $0x340] sm:$0xff] %vm2538, %v2309
        %2644 = vst.msk [vmem:[%s235 + $0x348] sm:$0xff] %vm2538, %v2311
        %2645 = vst.msk [vmem:[%s235 + $0x350] sm:$0xff] %vm2538, %v2314
        %2646 = vst.msk [vmem:[%s235 + $0x358] sm:$0xff] %vm2538, %v2316
        %2647 = vst.msk [vmem:[%s235 + $0x360] sm:$0xff] %vm2538, %v2319
        %2648 = vst.msk [vmem:[%s235 + $0x368] sm:$0xff] %vm2538, %v2321
        %2649 = vst.msk [vmem:[%s235 + $0x370] sm:$0xff] %vm2538, %v2324
        %2650 = vst.msk [vmem:[%s235 + $0x378] sm:$0xff] %vm2538, %v2326
        %2651 = vst.msk [vmem:[%s235 + $0x380] sm:$0xff] %vm2538, %v2329
        %2652 = vst.msk [vmem:[%s235 + $0x388] sm:$0xff] %vm2538, %v2331
        %2653 = vst.msk [vmem:[%s235 + $0x390] sm:$0xff] %vm2538, %v2334
        %2654 = vst.msk [vmem:[%s235 + $0x398] sm:$0xff] %vm2538, %v2336
        %2655 = vst.msk [vmem:[%s235 + $0x3a0] sm:$0xff] %vm2538, %v2339
        %2656 = vst.msk [vmem:[%s235 + $0x3a8] sm:$0xff] %vm2538, %v2341
        %2657 = vst.msk [vmem:[%s235 + $0x3b0] sm:$0xff] %vm2538, %v2344
        %2658 = vst.msk [vmem:[%s235 + $0x3b8] sm:$0xff] %vm2538, %v2346
        %2659 = vst.msk [vmem:[%s235 + $0x3c0] sm:$0xff] %vm2538, %v2349
        %2660 = vst.msk [vmem:[%s235 + $0x3c8] sm:$0xff] %vm2538, %v2351
        %2661 = vst.msk [vmem:[%s235 + $0x3d0] sm:$0xff] %vm2538, %v2354
        %2662 = vst.msk [vmem:[%s235 + $0x3d8] sm:$0xff] %vm2538, %v2356
        %2663 = vst.msk [vmem:[%s235 + $0x3e0] sm:$0xff] %vm2538, %v2359
        %2664 = vst.msk [vmem:[%s235 + $0x3e8] sm:$0xff] %vm2538, %v2361
        %2665 = vst.msk [vmem:[%s235 + $0x3f0] sm:$0xff] %vm2538, %v2364
        %2666 = vst.msk [vmem:[%s235 + $0x3f8] sm:$0xff] %vm2538, %v2366
        %2667 = vst.msk [vmem:[%s235 + $0x400] sm:$0xff] %vm2538, %v2369
        %2668 = vst.msk [vmem:[%s235 + $0x408] sm:$0xff] %vm2538, %v2371
        %2669 = vst.msk [vmem:[%s235 + $0x410] sm:$0xff] %vm2538, %v2374
        %2670 = vst.msk [vmem:[%s235 + $0x418] sm:$0xff] %vm2538, %v2376
        %2671 = vst.msk [vmem:[%s235 + $0x420] sm:$0xff] %vm2538, %v2379
        %2672 = vst.msk [vmem:[%s235 + $0x428] sm:$0xff] %vm2538, %v2381
        %2673 = vst.msk [vmem:[%s235 + $0x430] sm:$0xff] %vm2538, %v2384
        %2674 = vst.msk [vmem:[%s235 + $0x438] sm:$0xff] %vm2538, %v2386
        %2675 = vst.msk [vmem:[%s235 + $0x440] sm:$0xff] %vm2538, %v2389
        %2676 = vst.msk [vmem:[%s235 + $0x448] sm:$0xff] %vm2538, %v2391
        %2677 = vst.msk [vmem:[%s235 + $0x450] sm:$0xff] %vm2538, %v2394
        %2678 = vst.msk [vmem:[%s235 + $0x458] sm:$0xff] %vm2538, %v2396
        %2679 = vst.msk [vmem:[%s235 + $0x460] sm:$0xff] %vm2538, %v2399
        %2680 = vst.msk [vmem:[%s235 + $0x468] sm:$0xff] %vm2538, %v2401
        %2681 = vst.msk [vmem:[%s235 + $0x470] sm:$0xff] %vm2538, %v2404
        %2682 = vst.msk [vmem:[%s235 + $0x478] sm:$0xff] %vm2538, %v2406
        %2683 = vst.msk [vmem:[%s235 + $0x480] sm:$0xff] %vm2538, %v2409
        %2684 = vst.msk [vmem:[%s235 + $0x488] sm:$0xff] %vm2538, %v2411
        %2685 = vst.msk [vmem:[%s235 + $0x490] sm:$0xff] %vm2538, %v2414
        %2686 = vst.msk [vmem:[%s235 + $0x498] sm:$0xff] %vm2538, %v2416
        %2687 = vst.msk [vmem:[%s235 + $0x4a0] sm:$0xff] %vm2538, %v2419
        %2688 = vst.msk [vmem:[%s235 + $0x4a8] sm:$0xff] %vm2538, %v2421
        %2689 = vst.msk [vmem:[%s235 + $0x4b0] sm:$0xff] %vm2538, %v2424
        %2690 = vst.msk [vmem:[%s235 + $0x4b8] sm:$0xff] %vm2538, %v2426
        %2691 = vst.msk [vmem:[%s235 + $0x4c0] sm:$0xff] %vm2538, %v2429
        %2692 = vst.msk [vmem:[%s235 + $0x4c8] sm:$0xff] %vm2538, %v2431
        %2693 = vst.msk [vmem:[%s235 + $0x4d0] sm:$0xff] %vm2538, %v2434
        %2694 = vst.msk [vmem:[%s235 + $0x4d8] sm:$0xff] %vm2538, %v2436
        %2695 = vst.msk [vmem:[%s235 + $0x4e0] sm:$0xff] %vm2538, %v2439
        %2696 = vst.msk [vmem:[%s235 + $0x4e8] sm:$0xff] %vm2538, %v2441
        %2697 = vst.msk [vmem:[%s235 + $0x4f0] sm:$0xff] %vm2538, %v2444
        %2698 = vst.msk [vmem:[%s235 + $0x4f8] sm:$0xff] %vm2538, %v2446
        %2699 = vst.msk [vmem:[%s235 + $0x500] sm:$0xff] %vm2538, %v2449
        %2700 = vst.msk [vmem:[%s235 + $0x508] sm:$0xff] %vm2538, %v2451
        %2701 = vst.msk [vmem:[%s235 + $0x510] sm:$0xff] %vm2538, %v2454
        %2702 = vst.msk [vmem:[%s235 + $0x518] sm:$0xff] %vm2538, %v2456
        %2703 = vst.msk [vmem:[%s235 + $0x520] sm:$0xff] %vm2538, %v2459
        %2704 = vst.msk [vmem:[%s235 + $0x528] sm:$0xff] %vm2538, %v2461
        %2705 = vst.msk [vmem:[%s235 + $0x530] sm:$0xff] %vm2538, %v2464
        %2706 = vst.msk [vmem:[%s235 + $0x538] sm:$0xff] %vm2538, %v2466
        %2707 = vst.msk [vmem:[%s235 + $0x540] sm:$0xff] %vm2538, %v2469
        %2708 = vst.msk [vmem:[%s235 + $0x548] sm:$0xff] %vm2538, %v2471
        %2709 = vst.msk [vmem:[%s235 + $0x550] sm:$0xff] %vm2538, %v2474
        %2710 = vst.msk [vmem:[%s235 + $0x558] sm:$0xff] %vm2538, %v2476
        %2711 = vst.msk [vmem:[%s235 + $0x560] sm:$0xff] %vm2538, %v2479
        %2712 = vst.msk [vmem:[%s235 + $0x568] sm:$0xff] %vm2538, %v2481
        %2713 = vst.msk [vmem:[%s235 + $0x570] sm:$0xff] %vm2538, %v2484
        %2714 = vst.msk [vmem:[%s235 + $0x578] sm:$0xff] %vm2538, %v2486
        %2715 = vst.msk [vmem:[%s235 + $0x580] sm:$0xff] %vm2538, %v2489
        %2716 = vst.msk [vmem:[%s235 + $0x588] sm:$0xff] %vm2538, %v2491
        %2717 = vst.msk [vmem:[%s235 + $0x590] sm:$0xff] %vm2538, %v2494
        %2718 = vst.msk [vmem:[%s235 + $0x598] sm:$0xff] %vm2538, %v2496
        %2719 = vst.msk [vmem:[%s235 + $0x5a0] sm:$0xff] %vm2538, %v2499
        %2720 = vst.msk [vmem:[%s235 + $0x5a8] sm:$0xff] %vm2538, %v2501
        %2721 = vst.msk [vmem:[%s235 + $0x5b0] sm:$0xff] %vm2538, %v2504
        %2722 = vst.msk [vmem:[%s235 + $0x5b8] sm:$0xff] %vm2538, %v2506
        %2723 = vst.msk [vmem:[%s235 + $0x5c0] sm:$0xff] %vm2538, %v2509
        %2724 = vst.msk [vmem:[%s235 + $0x5c8] sm:$0xff] %vm2538, %v2511
        %2725 = vst.msk [vmem:[%s235 + $0x5d0] sm:$0xff] %vm2538, %v2514
        %2726 = vst.msk [vmem:[%s235 + $0x5d8] sm:$0xff] %vm2538, %v2516
        %2727 = vst.msk [vmem:[%s235 + $0x5e0] sm:$0xff] %vm2538, %v2519
        %2728 = vst.msk [vmem:[%s235 + $0x5e8] sm:$0xff] %vm2538, %v2521
        %2729 = vst.msk [vmem:[%s235 + $0x5f0] sm:$0xff] %vm2538, %v2524
        %2730 = vst.msk [vmem:[%s235 + $0x5f8] sm:$0xff] %vm2538, %v2526
        %2731 = vst.msk [vmem:[%s235 + $0x600] sm:$0xff] %vm2538, %v2529
        %2732 = vst.msk [vmem:[%s235 + $0x608] sm:$0xff] %vm2538, %v2531
        %2733 = vst.msk [vmem:[%s235 + $0x610] sm:$0xff] %vm2538, %v2534
        %2734 = vst.msk [vmem:[%s235 + $0x618] sm:$0xff] %vm2538, %v2536
        %p2735 = scmp.lt.s32.totalorder %s30, 1
        %s2736 = scalar_select %p2735, %s30, 1
        %p2737 = scmp.lt.s32.totalorder %s29, 0
        %s2738 = scalar_select %p2737, %s29, 0
        %s2739 = smul.addr %s2736, 196
        %s2740 = sadd.s32 %s2738, %s2739
        %s2741 = smul.addr %s2740, 8
        %s2742 = scalar_lea.vmem %s3, %s2741
        // Predicated region
        $region33: #{tpu_custom_call.1} parent=27 // pred_check
          %p2743 = pneg %p113
        $region34: #{tpu_custom_call.1} parent=27 // pred_check_branch
          %2745 = sbr.rel (%p2743) target = $region36
        $region35: #{tpu_custom_call.1} parent=27 // pred_region
          _
        $region36: #{tpu_custom_call.1} parent=27 // pred_fallthru
          _
      $region28: #{tpu_custom_call.1} parent=5 // pred_fallthru
        _
      %p2746 = scmp.le.s32.totalorder 2, %s20
      // Predicated region
      $region37: #{tpu_custom_call.1} parent=5 // pred_check
        %p2747 = pneg %p2746
      $region38: #{tpu_custom_call.1} parent=5 // pred_check_branch
        %2749 = sbr.rel (%p2747) target = $region40
      $region39: #{tpu_custom_call.1} parent=5 // pred_region
        %s2750 = ssub.s32 %s20, 2
        // Predicated region
        $region41: #{tpu_custom_call.1} parent=39 // pred_check
          %p2751 = pneg %p119
        $region42: #{tpu_custom_call.1} parent=39 // pred_check_branch
          %2753 = sbr.rel (%p2751) target = $region44
        $region43: #{tpu_custom_call.1} parent=39 // pred_region
          %p2754 = scmp.lt.s32.totalorder %s32, 1
          %s2755 = scalar_select %p2754, %s32, 1
          %p2756 = scmp.lt.s32.totalorder %s31, 0
          %s2757 = scalar_select %p2756, %s31, 0
          %s2758 = smul.addr %s2755, 196
          %s2759 = sadd.s32 %s2757, %s2758
          %s2760 = smul.addr %s2759, 8
          %s2761 = scalar_lea.vmem %s3, %s2760
        $region44: #{tpu_custom_call.1} parent=39 // pred_fallthru
          _
      $region40: #{tpu_custom_call.1} parent=5 // pred_fallthru
        _
    $region6: #{tpu_custom_call.1} parent=1 // loop_footer
      %s24 = sadd.s32 1, %s20
    $region7: #{tpu_custom_call.1} parent=1 // loop_footer_branch
      %19 = sbr.rel target = $region3
    $region8: #{tpu_custom_call.1} parent=1 // loop_exit
      _
    %2762 = vsyncpa [#allocation5], 1
    %s2763 = scalar_lea.sflag [#allocation5], 1
    %2764 = vsyncpa %s2763, 1

</llo_original>
